<compile_context>
chip_gen: v7x
topology: tpu7x:2x2x1
jax: 0.10.0
libtpu: 0.0.40
codegen_flags: <defaults>
</compile_context>

<pallas_src>
import numpy as np
import jax
import jax.numpy as jnp
from jax.experimental import pallas as pl
from jax.experimental.pallas import tpu as pltpu

F32 = jnp.float32
BF16 = jnp.bfloat16
BN_EPS = 1e-5


# ----------------------------------------------------------------------------
# Kernel
# ----------------------------------------------------------------------------
def build_kernel(num_blocks, pack, out_h, b_o2):
    """Returns the fused kernel; b_o2 is baked in as a trace-time constant."""

    def kernel(x_ref,
               w_in_ref, c_in_ref,
               w_blk_ref, c_blk_ref,
               w_o1_ref, c_o1_ref,
               w_o2_ref,
               out_ref):
        # ---- input layer: Linear (BN scale pre-folded) + shift -> ReLU ----
        h = jnp.dot(x_ref[...], w_in_ref[...], preferred_element_type=F32)
        h = jnp.maximum(h + c_in_ref[...], 0.0)

        # ---- residual blocks (statically unrolled; 128-lane packed) ----
        for i in range(num_blocks):
            y = jnp.dot(h.astype(BF16), w_blk_ref[i, 0],
                        preferred_element_type=F32)
            y = jnp.maximum(y + c_blk_ref[i, 0], 0.0)            # Linear+BN+ReLU
            y = jnp.dot(y.astype(BF16), w_blk_ref[i, 1],
                        preferred_element_type=F32)
            h = jnp.maximum(y + c_blk_ref[i, 1] + h, 0.0)        # +BN, residual, ReLU

        # ---- output layer: Linear(H,128)+BN+ReLU (block-diag packed), then
        #      Linear(128,1) as a VPU multiply + per-segment lane reduction
        #      (an N=1 matmul would waste the MXU). ----
        o = jnp.dot(h.astype(BF16), w_o1_ref[...], preferred_element_type=F32)
        o = jnp.maximum(o + c_o1_ref[...], 0.0)                  # (tb, pack*out_h)
        prod = o * w_o2_ref[...]
        cols = [jnp.sum(prod[:, j * out_h:(j + 1) * out_h],
                        axis=-1, keepdims=True)
                for j in range(pack)]
        out_ref[...] = jnp.concatenate(cols, axis=-1) + b_o2     # (tb, pack)

    return kernel


# ----------------------------------------------------------------------------
# Host-side parameter construction (BN folded into weights/shifts)
# ----------------------------------------------------------------------------
def fold_bn_into_linear(w, b, gamma, beta, mean, var):
    """Eval-mode BN after Linear -> (W * s, b*s + (beta - mean*s)).

    w is already pre-transposed to (in_features, out_features)."""
    s = gamma / jnp.sqrt(var + BN_EPS)
    shift = b * s + (beta - mean * s)
    return w * s[None, :], shift


def make_params(key, input_size, hidden_size, num_blocks):
    """Deterministic synthetic parameters matching the PyTorch module's shapes."""
    counter = [0]

    def next_key():
        counter[0] += 1
        return jax.random.fold_in(key, counter[0])

    def nrm(shape, scale=0.1):
        return (scale * jax.random.normal(next_key(), shape)).astype(F32)

    def linear(in_f, out_f):
        # PyTorch Linear weight is (out, in); pre-transpose to (in, out).
        w = nrm((out_f, in_f)).T
        b = nrm((out_f,))
        return w, b

    def bn(n):
        gamma = 1.0 + nrm((n,))
        beta = nrm((n,))
        mean = nrm((n,))
        var = 1.0 + jnp.abs(nrm((n,)))
        return gamma, beta, mean, var

    p = {}

    # input layer
    w, b = linear(input_size, hidden_size)
    w, c = fold_bn_into_linear(w, b, *bn(hidden_size))
    p["w_in"], p["c_in"] = w, c.reshape(1, hidden_size)

    # residual blocks
    w_blk, c_blk = [], []
    for _ in range(num_blocks):
        w1, b1 = linear(hidden_size, hidden_size)
        w1, c1 = fold_bn_into_linear(w1, b1, *bn(hidden_size))
        w2, b2 = linear(hidden_size, hidden_size)
        w2, c2 = fold_bn_into_linear(w2, b2, *bn(hidden_size))
        w_blk.append(jnp.stack([w1, w2]))                               # (2,H,H)
        c_blk.append(jnp.stack([c1.reshape(1, -1), c2.reshape(1, -1)])) # (2,1,H)
    p["w_blk"] = jnp.stack(w_blk)                                       # (NB,2,H,H)
    p["c_blk"] = jnp.stack(c_blk)                                       # (NB,2,1,H)

    # output layer
    w, b = linear(hidden_size, 128)
    w, c = fold_bn_into_linear(w, b, *bn(128))
    p["w_o1"], p["c_o1"] = w, c.reshape(1, 128)
    w, b = linear(128, 1)
    p["w_o2"] = w.reshape(1, 128)          # row vector for VPU multiply+reduce
    p["b_o2"] = b.reshape(1, 1)
    return p


def _block_diag(w, pack):
    in_f, out_f = w.shape
    out = jnp.zeros((pack * in_f, pack * out_f), w.dtype)
    for j in range(pack):
        out = out.at[j * in_f:(j + 1) * in_f, j * out_f:(j + 1) * out_f].set(w)
    return out


def pack_params(p, pack):
    """Block-diagonalise weights / lane-tile shifts so `pack` batch rows share
    the lane dimension; cast all MXU weights to bf16."""
    bd = lambda w: _block_diag(w, pack).astype(BF16)
    tile = lambda c: jnp.tile(c, (1, pack)).astype(F32)

    num_blocks = p["w_blk"].shape[0]
    return {
        "w_in": bd(p["w_in"]),                                   # (P*F, P*H) bf16
        "c_in": tile(p["c_in"]),                                 # (1, P*H)   f32
        "w_blk": jnp.stack([
            jnp.stack([bd(p["w_blk"][i, 0]), bd(p["w_blk"][i, 1])])
            for i in range(num_blocks)]),                        # (NB,2,P*H,P*H)
        "c_blk": jnp.stack([
            jnp.stack([tile(p["c_blk"][i, 0]), tile(p["c_blk"][i, 1])])
            for i in range(num_blocks)]),                        # (NB,2,1,P*H)
        "w_o1": bd(p["w_o1"]),                                   # (P*H, P*128)
        "c_o1": tile(p["c_o1"]),                                 # (1, P*128)
        "w_o2": tile(p["w_o2"]),                                 # (1, P*128) f32 (VPU)
        "b_o2": float(p["b_o2"].reshape(())),                    # trace-time constant
    }


# ----------------------------------------------------------------------------
# Wrapper
# ----------------------------------------------------------------------------
def _round_up(n, m):
    return ((n + m - 1) // m) * m


def ultra_resnet_v4_pallas(x, q, pack, tile_batch=2048):
    batch, feat = x.shape
    hidden = q["w_in"].shape[1] // pack
    out_h = q["w_o1"].shape[1] // pack
    num_blocks = q["w_blk"].shape[0]

    # --- lane-pack `pack` batch rows into one packed row (free, contiguous) ---
    b_pad = _round_up(batch, pack)
    if b_pad != batch:
        x = jnp.pad(x, ((0, b_pad - batch), (0, 0)))
    rows = b_pad // pack
    xp = x.reshape(rows, pack * feat).astype(BF16)

    # --- batch tile (in packed rows): multiple of 8 sublanes.  Weights <1 MiB
    #     and the x tile at tb=512 is ~128 KiB double-buffered, so VMEM is far
    #     from the limit on every generation (incl. v7x's 32 MiB scoped). ---
    tb = min(_round_up(max(tile_batch // pack, 8), 8), _round_up(rows, 8))
    # v7x megacore: keep >=2 grid steps when there is enough batch to split.
    if _round_up(rows, tb) == tb and rows > 8:
        tb = max(8, _round_up((tb + 1) // 2, 8))
    padded_rows = _round_up(rows, tb)
    if padded_rows != rows:
        xp = jnp.pad(xp, ((0, padded_rows - rows), (0, 0)))
    grid = (padded_rows // tb,)

    def resident(shape):
        nd = len(shape)
        return pl.BlockSpec(shape, lambda i, _nd=nd: (0,) * _nd)

    kernel = build_kernel(num_blocks, pack, out_h, q["b_o2"])

    out = pl.pallas_call(
        kernel,
        out_shape=jax.ShapeDtypeStruct((padded_rows, pack), F32),
        grid=grid,
        in_specs=[
            pl.BlockSpec((tb, pack * feat), lambda i: (i, 0)),        # x (tiled)
            resident((pack * feat, pack * hidden)),                   # w_in (block-diag)
            resident((1, pack * hidden)),                             # c_in
            resident((num_blocks, 2, pack * hidden, pack * hidden)),  # w_blk
            resident((num_blocks, 2, 1, pack * hidden)),              # c_blk
            resident((pack * hidden, pack * out_h)),                  # w_o1
            resident((1, pack * out_h)),                              # c_o1
            resident((1, pack * out_h)),                              # w_o2 (tiled row)
        ],
        out_specs=pl.BlockSpec((tb, pack), lambda i: (i, 0)),
        compiler_params=pltpu.CompilerParams(
            dimension_semantics=("parallel",),
        ),
    )(xp, q["w_in"], q["c_in"], q["w_blk"], q["c_blk"],
      q["w_o1"], q["c_o1"], q["w_o2"])

    # Row-major flatten of (rows, pack) recovers the original batch order;
    # padded rows/segments carry garbage and are sliced off here.
    res = out.reshape(-1)[:batch]
    # PyTorch .squeeze() on a (1,1) output yields a 0-d tensor.
    return res.reshape(()) if batch == 1 else res


# ----------------------------------------------------------------------------
# Pure-JAX reference (identical math, unpacked f32 params)
# ----------------------------------------------------------------------------
def ultra_resnet_v4_ref(x, p):
    h = jnp.maximum((x @ p["w_in"]) + p["c_in"], 0.0)
    for i in range(p["w_blk"].shape[0]):
        y = jnp.maximum((h @ p["w_blk"][i, 0]) + p["c_blk"][i, 0], 0.0)
        y = (y @ p["w_blk"][i, 1]) + p["c_blk"][i, 1]
        h = jnp.maximum(y + h, 0.0)
    o = jnp.maximum((h @ p["w_o1"]) + p["c_o1"], 0.0)
    out = jnp.sum(o * p["w_o2"], axis=-1, keepdims=True) + p["b_o2"]
    return out.squeeze(-1)


if __name__ == "__main__":
    INPUT_SIZE = 32
    HIDDEN_SIZE = 32
    NUM_BLOCKS = 6
    BATCH = 8
    PACK = 4   # 4 rows * 32 features = 128 lanes (PACK=8 -> 256 lanes on v6e/v7x)

    key = jax.random.PRNGKey(0)
    k_x, k_p = jax.random.split(key)
    x = jax.random.normal(k_x, (BATCH, INPUT_SIZE), dtype=F32)
    params = make_params(k_p, INPUT_SIZE, HIDDEN_SIZE, NUM_BLOCKS)
    packed = pack_params(params, PACK)

    out = jax.block_until_ready(ultra_resnet_v4_pallas(x, packed, PACK))
    ref = jax.block_until_ready(ultra_resnet_v4_ref(x, params))

    assert out.shape == (BATCH,), out.shape
    # bf16 MXU operands (f32 accumulation) vs f32 reference -> loose tolerance.
    np.testing.assert_allclose(np.asarray(out), np.asarray(ref),
                               rtol=5e-2, atol=5e-2)
    print("KERNEL_OK")
</pallas_src>

<mosaic_0001>
module attributes {stable_mosaic.version = 11 : i64} {
  func.func @kernel(%arg0: i32, %arg1: memref<8x128xbf16, #tpu.memory_space<vmem>>, %arg2: memref<128x128xbf16, #tpu.memory_space<vmem>>, %arg3: memref<1x128xf32, #tpu.memory_space<vmem>>, %arg4: memref<6x2x128x128xbf16, #tpu.memory_space<vmem>>, %arg5: memref<6x2x1x128xf32, #tpu.memory_space<vmem>>, %arg6: memref<128x512xbf16, #tpu.memory_space<vmem>>, %arg7: memref<1x512xf32, #tpu.memory_space<vmem>>, %arg8: memref<1x512xf32, #tpu.memory_space<vmem>>, %arg9: memref<8x4xf32, #tpu.memory_space<vmem>>) attributes {dimension_semantics = [#tpu.dimension_semantics<parallel>], iteration_bounds = array<i64: 1>, scalar_prefetch = 0 : i64, scratch_operands = 0 : i64, tpu.core_type = #tpu.core_type<tc>, window_params = [{transform_indices = @transform_0, window_bounds = array<i64: 8, 128>}, {pipeline_mode = #tpu.pipeline_mode<synchronous>, transform_indices = @transform_1, window_bounds = array<i64: 128, 128>}, {pipeline_mode = #tpu.pipeline_mode<synchronous>, transform_indices = @transform_2, window_bounds = array<i64: 1, 128>}, {pipeline_mode = #tpu.pipeline_mode<synchronous>, transform_indices = @transform_3, window_bounds = array<i64: 6, 2, 128, 128>}, {pipeline_mode = #tpu.pipeline_mode<synchronous>, transform_indices = @transform_4, window_bounds = array<i64: 6, 2, 1, 128>}, {pipeline_mode = #tpu.pipeline_mode<synchronous>, transform_indices = @transform_5, window_bounds = array<i64: 128, 512>}, {pipeline_mode = #tpu.pipeline_mode<synchronous>, transform_indices = @transform_6, window_bounds = array<i64: 1, 512>}, {pipeline_mode = #tpu.pipeline_mode<synchronous>, transform_indices = @transform_7, window_bounds = array<i64: 1, 512>}, {transform_indices = @transform_8, window_bounds = array<i64: 8, 4>}]} {
    %c0 = arith.constant 0 : index
    %c0_0 = arith.constant 0 : index
    %0 = vector.load %arg1[%c0, %c0_0] : memref<8x128xbf16, #tpu.memory_space<vmem>>, vector<8x128xbf16>
    %c0_1 = arith.constant 0 : index
    %c0_2 = arith.constant 0 : index
    %1 = vector.load %arg2[%c0_1, %c0_2] : memref<128x128xbf16, #tpu.memory_space<vmem>>, vector<128x128xbf16>
    %cst = arith.constant dense<0.000000e+00> : vector<8x128xf32>
    %2 = tpu.matmul %0, %1, %cst {dimension_numbers = #tpu.dot_dimension_numbers<[1], [0], [0], [1], [0, 0, 1, 1], [], []>} : vector<8x128xbf16>, vector<128x128xbf16>, vector<8x128xf32> -> vector<8x128xf32>
    %c0_3 = arith.constant 0 : index
    %c0_4 = arith.constant 0 : index
    %3 = vector.load %arg3[%c0_3, %c0_4] : memref<1x128xf32, #tpu.memory_space<vmem>>, vector<1x128xf32>
    %4 = vector.broadcast %3 : vector<1x128xf32> to vector<8x128xf32>
    %5 = arith.addf %2, %4 : vector<8x128xf32>
    %cst_5 = arith.constant 0.000000e+00 : f32
    %6 = vector.broadcast %cst_5 : f32 to vector<8x128xf32>
    %7 = arith.maximumf %5, %6 : vector<8x128xf32>
    %8 = arith.truncf %7 : vector<8x128xf32> to vector<8x128xbf16>
    %c0_6 = arith.constant 0 : index
    %c0_7 = arith.constant 0 : index
    %c0_8 = arith.constant 0 : index
    %c0_9 = arith.constant 0 : index
    %9 = vector.load %arg4[%c0_6, %c0_7, %c0_8, %c0_9] : memref<6x2x128x128xbf16, #tpu.memory_space<vmem>>, vector<1x1x128x128xbf16>
    %10 = vector.shape_cast %9 : vector<1x1x128x128xbf16> to vector<128x128xbf16>
    %cst_10 = arith.constant dense<0.000000e+00> : vector<8x128xf32>
    %11 = tpu.matmul %8, %10, %cst_10 {dimension_numbers = #tpu.dot_dimension_numbers<[1], [0], [0], [1], [0, 0, 1, 1], [], []>} : vector<8x128xbf16>, vector<128x128xbf16>, vector<8x128xf32> -> vector<8x128xf32>
    %c0_11 = arith.constant 0 : index
    %c0_12 = arith.constant 0 : index
    %c0_13 = arith.constant 0 : index
    %c0_14 = arith.constant 0 : index
    %12 = vector.load %arg5[%c0_11, %c0_12, %c0_13, %c0_14] : memref<6x2x1x128xf32, #tpu.memory_space<vmem>>, vector<1x1x1x128xf32>
    %13 = vector.shape_cast %12 : vector<1x1x1x128xf32> to vector<1x128xf32>
    %14 = vector.broadcast %13 : vector<1x128xf32> to vector<8x128xf32>
    %15 = arith.addf %11, %14 : vector<8x128xf32>
    %cst_15 = arith.constant 0.000000e+00 : f32
    %16 = vector.broadcast %cst_15 : f32 to vector<8x128xf32>
    %17 = arith.maximumf %15, %16 : vector<8x128xf32>
    %18 = arith.truncf %17 : vector<8x128xf32> to vector<8x128xbf16>
    %c0_16 = arith.constant 0 : index
    %c1 = arith.constant 1 : index
    %c0_17 = arith.constant 0 : index
    %c0_18 = arith.constant 0 : index
    %19 = vector.load %arg4[%c0_16, %c1, %c0_17, %c0_18] : memref<6x2x128x128xbf16, #tpu.memory_space<vmem>>, vector<1x1x128x128xbf16>
    %20 = vector.shape_cast %19 : vector<1x1x128x128xbf16> to vector<128x128xbf16>
    %cst_19 = arith.constant dense<0.000000e+00> : vector<8x128xf32>
    %21 = tpu.matmul %18, %20, %cst_19 {dimension_numbers = #tpu.dot_dimension_numbers<[1], [0], [0], [1], [0, 0, 1, 1], [], []>} : vector<8x128xbf16>, vector<128x128xbf16>, vector<8x128xf32> -> vector<8x128xf32>
    %c0_20 = arith.constant 0 : index
    %c1_21 = arith.constant 1 : index
    %c0_22 = arith.constant 0 : index
    %c0_23 = arith.constant 0 : index
    %22 = vector.load %arg5[%c0_20, %c1_21, %c0_22, %c0_23] : memref<6x2x1x128xf32, #tpu.memory_space<vmem>>, vector<1x1x1x128xf32>
    %23 = vector.shape_cast %22 : vector<1x1x1x128xf32> to vector<1x128xf32>
    %24 = vector.broadcast %23 : vector<1x128xf32> to vector<8x128xf32>
    %25 = arith.addf %21, %24 : vector<8x128xf32>
    %26 = arith.addf %25, %7 : vector<8x128xf32>
    %cst_24 = arith.constant 0.000000e+00 : f32
    %27 = vector.broadcast %cst_24 : f32 to vector<8x128xf32>
    %28 = arith.maximumf %26, %27 : vector<8x128xf32>
    %29 = arith.truncf %28 : vector<8x128xf32> to vector<8x128xbf16>
    %c1_25 = arith.constant 1 : index
    %c0_26 = arith.constant 0 : index
    %c0_27 = arith.constant 0 : index
    %c0_28 = arith.constant 0 : index
    %30 = vector.load %arg4[%c1_25, %c0_26, %c0_27, %c0_28] : memref<6x2x128x128xbf16, #tpu.memory_space<vmem>>, vector<1x1x128x128xbf16>
    %31 = vector.shape_cast %30 : vector<1x1x128x128xbf16> to vector<128x128xbf16>
    %cst_29 = arith.constant dense<0.000000e+00> : vector<8x128xf32>
    %32 = tpu.matmul %29, %31, %cst_29 {dimension_numbers = #tpu.dot_dimension_numbers<[1], [0], [0], [1], [0, 0, 1, 1], [], []>} : vector<8x128xbf16>, vector<128x128xbf16>, vector<8x128xf32> -> vector<8x128xf32>
    %c1_30 = arith.constant 1 : index
    %c0_31 = arith.constant 0 : index
    %c0_32 = arith.constant 0 : index
    %c0_33 = arith.constant 0 : index
    %33 = vector.load %arg5[%c1_30, %c0_31, %c0_32, %c0_33] : memref<6x2x1x128xf32, #tpu.memory_space<vmem>>, vector<1x1x1x128xf32>
    %34 = vector.shape_cast %33 : vector<1x1x1x128xf32> to vector<1x128xf32>
    %35 = vector.broadcast %34 : vector<1x128xf32> to vector<8x128xf32>
    %36 = arith.addf %32, %35 : vector<8x128xf32>
    %cst_34 = arith.constant 0.000000e+00 : f32
    %37 = vector.broadcast %cst_34 : f32 to vector<8x128xf32>
    %38 = arith.maximumf %36, %37 : vector<8x128xf32>
    %39 = arith.truncf %38 : vector<8x128xf32> to vector<8x128xbf16>
    %c1_35 = arith.constant 1 : index
    %c1_36 = arith.constant 1 : index
    %c0_37 = arith.constant 0 : index
    %c0_38 = arith.constant 0 : index
    %40 = vector.load %arg4[%c1_35, %c1_36, %c0_37, %c0_38] : memref<6x2x128x128xbf16, #tpu.memory_space<vmem>>, vector<1x1x128x128xbf16>
    %41 = vector.shape_cast %40 : vector<1x1x128x128xbf16> to vector<128x128xbf16>
    %cst_39 = arith.constant dense<0.000000e+00> : vector<8x128xf32>
    %42 = tpu.matmul %39, %41, %cst_39 {dimension_numbers = #tpu.dot_dimension_numbers<[1], [0], [0], [1], [0, 0, 1, 1], [], []>} : vector<8x128xbf16>, vector<128x128xbf16>, vector<8x128xf32> -> vector<8x128xf32>
    %c1_40 = arith.constant 1 : index
    %c1_41 = arith.constant 1 : index
    %c0_42 = arith.constant 0 : index
    %c0_43 = arith.constant 0 : index
    %43 = vector.load %arg5[%c1_40, %c1_41, %c0_42, %c0_43] : memref<6x2x1x128xf32, #tpu.memory_space<vmem>>, vector<1x1x1x128xf32>
    %44 = vector.shape_cast %43 : vector<1x1x1x128xf32> to vector<1x128xf32>
    %45 = vector.broadcast %44 : vector<1x128xf32> to vector<8x128xf32>
    %46 = arith.addf %42, %45 : vector<8x128xf32>
    %47 = arith.addf %46, %28 : vector<8x128xf32>
    %cst_44 = arith.constant 0.000000e+00 : f32
    %48 = vector.broadcast %cst_44 : f32 to vector<8x128xf32>
    %49 = arith.maximumf %47, %48 : vector<8x128xf32>
    %50 = arith.truncf %49 : vector<8x128xf32> to vector<8x128xbf16>
    %c2 = arith.constant 2 : index
    %c0_45 = arith.constant 0 : index
    %c0_46 = arith.constant 0 : index
    %c0_47 = arith.constant 0 : index
    %51 = vector.load %arg4[%c2, %c0_45, %c0_46, %c0_47] : memref<6x2x128x128xbf16, #tpu.memory_space<vmem>>, vector<1x1x128x128xbf16>
    %52 = vector.shape_cast %51 : vector<1x1x128x128xbf16> to vector<128x128xbf16>
    %cst_48 = arith.constant dense<0.000000e+00> : vector<8x128xf32>
    %53 = tpu.matmul %50, %52, %cst_48 {dimension_numbers = #tpu.dot_dimension_numbers<[1], [0], [0], [1], [0, 0, 1, 1], [], []>} : vector<8x128xbf16>, vector<128x128xbf16>, vector<8x128xf32> -> vector<8x128xf32>
    %c2_49 = arith.constant 2 : index
    %c0_50 = arith.constant 0 : index
    %c0_51 = arith.constant 0 : index
    %c0_52 = arith.constant 0 : index
    %54 = vector.load %arg5[%c2_49, %c0_50, %c0_51, %c0_52] : memref<6x2x1x128xf32, #tpu.memory_space<vmem>>, vector<1x1x1x128xf32>
    %55 = vector.shape_cast %54 : vector<1x1x1x128xf32> to vector<1x128xf32>
    %56 = vector.broadcast %55 : vector<1x128xf32> to vector<8x128xf32>
    %57 = arith.addf %53, %56 : vector<8x128xf32>
    %cst_53 = arith.constant 0.000000e+00 : f32
    %58 = vector.broadcast %cst_53 : f32 to vector<8x128xf32>
    %59 = arith.maximumf %57, %58 : vector<8x128xf32>
    %60 = arith.truncf %59 : vector<8x128xf32> to vector<8x128xbf16>
    %c2_54 = arith.constant 2 : index
    %c1_55 = arith.constant 1 : index
    %c0_56 = arith.constant 0 : index
    %c0_57 = arith.constant 0 : index
    %61 = vector.load %arg4[%c2_54, %c1_55, %c0_56, %c0_57] : memref<6x2x128x128xbf16, #tpu.memory_space<vmem>>, vector<1x1x128x128xbf16>
    %62 = vector.shape_cast %61 : vector<1x1x128x128xbf16> to vector<128x128xbf16>
    %cst_58 = arith.constant dense<0.000000e+00> : vector<8x128xf32>
    %63 = tpu.matmul %60, %62, %cst_58 {dimension_numbers = #tpu.dot_dimension_numbers<[1], [0], [0], [1], [0, 0, 1, 1], [], []>} : vector<8x128xbf16>, vector<128x128xbf16>, vector<8x128xf32> -> vector<8x128xf32>
    %c2_59 = arith.constant 2 : index
    %c1_60 = arith.constant 1 : index
    %c0_61 = arith.constant 0 : index
    %c0_62 = arith.constant 0 : index
    %64 = vector.load %arg5[%c2_59, %c1_60, %c0_61, %c0_62] : memref<6x2x1x128xf32, #tpu.memory_space<vmem>>, vector<1x1x1x128xf32>
    %65 = vector.shape_cast %64 : vector<1x1x1x128xf32> to vector<1x128xf32>
    %66 = vector.broadcast %65 : vector<1x128xf32> to vector<8x128xf32>
    %67 = arith.addf %63, %66 : vector<8x128xf32>
    %68 = arith.addf %67, %49 : vector<8x128xf32>
    %cst_63 = arith.constant 0.000000e+00 : f32
    %69 = vector.broadcast %cst_63 : f32 to vector<8x128xf32>
    %70 = arith.maximumf %68, %69 : vector<8x128xf32>
    %71 = arith.truncf %70 : vector<8x128xf32> to vector<8x128xbf16>
    %c3 = arith.constant 3 : index
    %c0_64 = arith.constant 0 : index
    %c0_65 = arith.constant 0 : index
    %c0_66 = arith.constant 0 : index
    %72 = vector.load %arg4[%c3, %c0_64, %c0_65, %c0_66] : memref<6x2x128x128xbf16, #tpu.memory_space<vmem>>, vector<1x1x128x128xbf16>
    %73 = vector.shape_cast %72 : vector<1x1x128x128xbf16> to vector<128x128xbf16>
    %cst_67 = arith.constant dense<0.000000e+00> : vector<8x128xf32>
    %74 = tpu.matmul %71, %73, %cst_67 {dimension_numbers = #tpu.dot_dimension_numbers<[1], [0], [0], [1], [0, 0, 1, 1], [], []>} : vector<8x128xbf16>, vector<128x128xbf16>, vector<8x128xf32> -> vector<8x128xf32>
    %c3_68 = arith.constant 3 : index
    %c0_69 = arith.constant 0 : index
    %c0_70 = arith.constant 0 : index
    %c0_71 = arith.constant 0 : index
    %75 = vector.load %arg5[%c3_68, %c0_69, %c0_70, %c0_71] : memref<6x2x1x128xf32, #tpu.memory_space<vmem>>, vector<1x1x1x128xf32>
    %76 = vector.shape_cast %75 : vector<1x1x1x128xf32> to vector<1x128xf32>
    %77 = vector.broadcast %76 : vector<1x128xf32> to vector<8x128xf32>
    %78 = arith.addf %74, %77 : vector<8x128xf32>
    %cst_72 = arith.constant 0.000000e+00 : f32
    %79 = vector.broadcast %cst_72 : f32 to vector<8x128xf32>
    %80 = arith.maximumf %78, %79 : vector<8x128xf32>
    %81 = arith.truncf %80 : vector<8x128xf32> to vector<8x128xbf16>
    %c3_73 = arith.constant 3 : index
    %c1_74 = arith.constant 1 : index
    %c0_75 = arith.constant 0 : index
    %c0_76 = arith.constant 0 : index
    %82 = vector.load %arg4[%c3_73, %c1_74, %c0_75, %c0_76] : memref<6x2x128x128xbf16, #tpu.memory_space<vmem>>, vector<1x1x128x128xbf16>
    %83 = vector.shape_cast %82 : vector<1x1x128x128xbf16> to vector<128x128xbf16>
    %cst_77 = arith.constant dense<0.000000e+00> : vector<8x128xf32>
    %84 = tpu.matmul %81, %83, %cst_77 {dimension_numbers = #tpu.dot_dimension_numbers<[1], [0], [0], [1], [0, 0, 1, 1], [], []>} : vector<8x128xbf16>, vector<128x128xbf16>, vector<8x128xf32> -> vector<8x128xf32>
    %c3_78 = arith.constant 3 : index
    %c1_79 = arith.constant 1 : index
    %c0_80 = arith.constant 0 : index
    %c0_81 = arith.constant 0 : index
    %85 = vector.load %arg5[%c3_78, %c1_79, %c0_80, %c0_81] : memref<6x2x1x128xf32, #tpu.memory_space<vmem>>, vector<1x1x1x128xf32>
    %86 = vector.shape_cast %85 : vector<1x1x1x128xf32> to vector<1x128xf32>
    %87 = vector.broadcast %86 : vector<1x128xf32> to vector<8x128xf32>
    %88 = arith.addf %84, %87 : vector<8x128xf32>
    %89 = arith.addf %88, %70 : vector<8x128xf32>
    %cst_82 = arith.constant 0.000000e+00 : f32
    %90 = vector.broadcast %cst_82 : f32 to vector<8x128xf32>
    %91 = arith.maximumf %89, %90 : vector<8x128xf32>
    %92 = arith.truncf %91 : vector<8x128xf32> to vector<8x128xbf16>
    %c4 = arith.constant 4 : index
    %c0_83 = arith.constant 0 : index
    %c0_84 = arith.constant 0 : index
    %c0_85 = arith.constant 0 : index
    %93 = vector.load %arg4[%c4, %c0_83, %c0_84, %c0_85] : memref<6x2x128x128xbf16, #tpu.memory_space<vmem>>, vector<1x1x128x128xbf16>
    %94 = vector.shape_cast %93 : vector<1x1x128x128xbf16> to vector<128x128xbf16>
    %cst_86 = arith.constant dense<0.000000e+00> : vector<8x128xf32>
    %95 = tpu.matmul %92, %94, %cst_86 {dimension_numbers = #tpu.dot_dimension_numbers<[1], [0], [0], [1], [0, 0, 1, 1], [], []>} : vector<8x128xbf16>, vector<128x128xbf16>, vector<8x128xf32> -> vector<8x128xf32>
    %c4_87 = arith.constant 4 : index
    %c0_88 = arith.constant 0 : index
    %c0_89 = arith.constant 0 : index
    %c0_90 = arith.constant 0 : index
    %96 = vector.load %arg5[%c4_87, %c0_88, %c0_89, %c0_90] : memref<6x2x1x128xf32, #tpu.memory_space<vmem>>, vector<1x1x1x128xf32>
    %97 = vector.shape_cast %96 : vector<1x1x1x128xf32> to vector<1x128xf32>
    %98 = vector.broadcast %97 : vector<1x128xf32> to vector<8x128xf32>
    %99 = arith.addf %95, %98 : vector<8x128xf32>
    %cst_91 = arith.constant 0.000000e+00 : f32
    %100 = vector.broadcast %cst_91 : f32 to vector<8x128xf32>
    %101 = arith.maximumf %99, %100 : vector<8x128xf32>
    %102 = arith.truncf %101 : vector<8x128xf32> to vector<8x128xbf16>
    %c4_92 = arith.constant 4 : index
    %c1_93 = arith.constant 1 : index
    %c0_94 = arith.constant 0 : index
    %c0_95 = arith.constant 0 : index
    %103 = vector.load %arg4[%c4_92, %c1_93, %c0_94, %c0_95] : memref<6x2x128x128xbf16, #tpu.memory_space<vmem>>, vector<1x1x128x128xbf16>
    %104 = vector.shape_cast %103 : vector<1x1x128x128xbf16> to vector<128x128xbf16>
    %cst_96 = arith.constant dense<0.000000e+00> : vector<8x128xf32>
    %105 = tpu.matmul %102, %104, %cst_96 {dimension_numbers = #tpu.dot_dimension_numbers<[1], [0], [0], [1], [0, 0, 1, 1], [], []>} : vector<8x128xbf16>, vector<128x128xbf16>, vector<8x128xf32> -> vector<8x128xf32>
    %c4_97 = arith.constant 4 : index
    %c1_98 = arith.constant 1 : index
    %c0_99 = arith.constant 0 : index
    %c0_100 = arith.constant 0 : index
    %106 = vector.load %arg5[%c4_97, %c1_98, %c0_99, %c0_100] : memref<6x2x1x128xf32, #tpu.memory_space<vmem>>, vector<1x1x1x128xf32>
    %107 = vector.shape_cast %106 : vector<1x1x1x128xf32> to vector<1x128xf32>
    %108 = vector.broadcast %107 : vector<1x128xf32> to vector<8x128xf32>
    %109 = arith.addf %105, %108 : vector<8x128xf32>
    %110 = arith.addf %109, %91 : vector<8x128xf32>
    %cst_101 = arith.constant 0.000000e+00 : f32
    %111 = vector.broadcast %cst_101 : f32 to vector<8x128xf32>
    %112 = arith.maximumf %110, %111 : vector<8x128xf32>
    %113 = arith.truncf %112 : vector<8x128xf32> to vector<8x128xbf16>
    %c5 = arith.constant 5 : index
    %c0_102 = arith.constant 0 : index
    %c0_103 = arith.constant 0 : index
    %c0_104 = arith.constant 0 : index
    %114 = vector.load %arg4[%c5, %c0_102, %c0_103, %c0_104] : memref<6x2x128x128xbf16, #tpu.memory_space<vmem>>, vector<1x1x128x128xbf16>
    %115 = vector.shape_cast %114 : vector<1x1x128x128xbf16> to vector<128x128xbf16>
    %cst_105 = arith.constant dense<0.000000e+00> : vector<8x128xf32>
    %116 = tpu.matmul %113, %115, %cst_105 {dimension_numbers = #tpu.dot_dimension_numbers<[1], [0], [0], [1], [0, 0, 1, 1], [], []>} : vector<8x128xbf16>, vector<128x128xbf16>, vector<8x128xf32> -> vector<8x128xf32>
    %c5_106 = arith.constant 5 : index
    %c0_107 = arith.constant 0 : index
    %c0_108 = arith.constant 0 : index
    %c0_109 = arith.constant 0 : index
    %117 = vector.load %arg5[%c5_106, %c0_107, %c0_108, %c0_109] : memref<6x2x1x128xf32, #tpu.memory_space<vmem>>, vector<1x1x1x128xf32>
    %118 = vector.shape_cast %117 : vector<1x1x1x128xf32> to vector<1x128xf32>
    %119 = vector.broadcast %118 : vector<1x128xf32> to vector<8x128xf32>
    %120 = arith.addf %116, %119 : vector<8x128xf32>
    %cst_110 = arith.constant 0.000000e+00 : f32
    %121 = vector.broadcast %cst_110 : f32 to vector<8x128xf32>
    %122 = arith.maximumf %120, %121 : vector<8x128xf32>
    %123 = arith.truncf %122 : vector<8x128xf32> to vector<8x128xbf16>
    %c5_111 = arith.constant 5 : index
    %c1_112 = arith.constant 1 : index
    %c0_113 = arith.constant 0 : index
    %c0_114 = arith.constant 0 : index
    %124 = vector.load %arg4[%c5_111, %c1_112, %c0_113, %c0_114] : memref<6x2x128x128xbf16, #tpu.memory_space<vmem>>, vector<1x1x128x128xbf16>
    %125 = vector.shape_cast %124 : vector<1x1x128x128xbf16> to vector<128x128xbf16>
    %cst_115 = arith.constant dense<0.000000e+00> : vector<8x128xf32>
    %126 = tpu.matmul %123, %125, %cst_115 {dimension_numbers = #tpu.dot_dimension_numbers<[1], [0], [0], [1], [0, 0, 1, 1], [], []>} : vector<8x128xbf16>, vector<128x128xbf16>, vector<8x128xf32> -> vector<8x128xf32>
    %c5_116 = arith.constant 5 : index
    %c1_117 = arith.constant 1 : index
    %c0_118 = arith.constant 0 : index
    %c0_119 = arith.constant 0 : index
    %127 = vector.load %arg5[%c5_116, %c1_117, %c0_118, %c0_119] : memref<6x2x1x128xf32, #tpu.memory_space<vmem>>, vector<1x1x1x128xf32>
    %128 = vector.shape_cast %127 : vector<1x1x1x128xf32> to vector<1x128xf32>
    %129 = vector.broadcast %128 : vector<1x128xf32> to vector<8x128xf32>
    %130 = arith.addf %126, %129 : vector<8x128xf32>
    %131 = arith.addf %130, %112 : vector<8x128xf32>
    %cst_120 = arith.constant 0.000000e+00 : f32
    %132 = vector.broadcast %cst_120 : f32 to vector<8x128xf32>
    %133 = arith.maximumf %131, %132 : vector<8x128xf32>
    %134 = arith.truncf %133 : vector<8x128xf32> to vector<8x128xbf16>
    %c0_121 = arith.constant 0 : index
    %c0_122 = arith.constant 0 : index
    %135 = vector.load %arg6[%c0_121, %c0_122] : memref<128x512xbf16, #tpu.memory_space<vmem>>, vector<128x512xbf16>
    %cst_123 = arith.constant dense<0.000000e+00> : vector<8x512xf32>
    %136 = tpu.matmul %134, %135, %cst_123 {dimension_numbers = #tpu.dot_dimension_numbers<[1], [0], [0], [1], [0, 0, 1, 1], [], []>} : vector<8x128xbf16>, vector<128x512xbf16>, vector<8x512xf32> -> vector<8x512xf32>
    %c0_124 = arith.constant 0 : index
    %c0_125 = arith.constant 0 : index
    %137 = vector.load %arg7[%c0_124, %c0_125] : memref<1x512xf32, #tpu.memory_space<vmem>>, vector<1x512xf32>
    %138 = vector.broadcast %137 : vector<1x512xf32> to vector<8x512xf32>
    %139 = arith.addf %136, %138 : vector<8x512xf32>
    %cst_126 = arith.constant 0.000000e+00 : f32
    %140 = vector.broadcast %cst_126 : f32 to vector<8x512xf32>
    %141 = arith.maximumf %139, %140 : vector<8x512xf32>
    %c0_127 = arith.constant 0 : index
    %c0_128 = arith.constant 0 : index
    %142 = vector.load %arg8[%c0_127, %c0_128] : memref<1x512xf32, #tpu.memory_space<vmem>>, vector<1x512xf32>
    %143 = vector.broadcast %142 : vector<1x512xf32> to vector<8x512xf32>
    %144 = arith.mulf %141, %143 : vector<8x512xf32>
    %145 = vector.extract_strided_slice %144 {offsets = [0, 0], sizes = [8, 128], strides = [1, 1]} : vector<8x512xf32> to vector<8x128xf32>
    %cst_129 = arith.constant dense<0.000000e+00> : vector<8xf32>
    %146 = vector.multi_reduction <add>, %145, %cst_129 [1] : vector<8x128xf32> to vector<8xf32>
    %147 = vector.shape_cast %146 : vector<8xf32> to vector<8x1xf32>
    %148 = vector.extract_strided_slice %144 {offsets = [0, 128], sizes = [8, 128], strides = [1, 1]} : vector<8x512xf32> to vector<8x128xf32>
    %cst_130 = arith.constant dense<0.000000e+00> : vector<8xf32>
    %149 = vector.multi_reduction <add>, %148, %cst_130 [1] : vector<8x128xf32> to vector<8xf32>
    %150 = vector.shape_cast %149 : vector<8xf32> to vector<8x1xf32>
    %151 = vector.extract_strided_slice %144 {offsets = [0, 256], sizes = [8, 128], strides = [1, 1]} : vector<8x512xf32> to vector<8x128xf32>
    %cst_131 = arith.constant dense<0.000000e+00> : vector<8xf32>
    %152 = vector.multi_reduction <add>, %151, %cst_131 [1] : vector<8x128xf32> to vector<8xf32>
    %153 = vector.shape_cast %152 : vector<8xf32> to vector<8x1xf32>
    %154 = vector.extract_strided_slice %144 {offsets = [0, 384], sizes = [8, 128], strides = [1, 1]} : vector<8x512xf32> to vector<8x128xf32>
    %cst_132 = arith.constant dense<0.000000e+00> : vector<8xf32>
    %155 = vector.multi_reduction <add>, %154, %cst_132 [1] : vector<8x128xf32> to vector<8xf32>
    %156 = vector.shape_cast %155 : vector<8xf32> to vector<8x1xf32>
    %157 = tpu.concatenate %147, %150, %153, %156 in 1 : vector<8x1xf32>, vector<8x1xf32>, vector<8x1xf32>, vector<8x1xf32> -> vector<8x4xf32>
    %cst_133 = arith.constant -0.0253408197 : f32
    %158 = vector.broadcast %cst_133 : f32 to vector<8x4xf32>
    %159 = arith.addf %157, %158 : vector<8x4xf32>
    %c0_134 = arith.constant 0 : index
    %c0_135 = arith.constant 0 : index
    %160 = vector.load %arg9[%c0_134, %c0_135] : memref<8x4xf32, #tpu.memory_space<vmem>>, vector<8x4xf32>
    tpu.vector_store %arg9[%c0_134, %c0_135], %159 {strides = array<i32>} : memref<8x4xf32, #tpu.memory_space<vmem>>, vector<8x4xf32>,
    return
  }
  func.func @transform_0(%arg0: i32) -> (i32, i32) {
    %c0_i32 = arith.constant 0 : i32
    %c0_i32_0 = arith.constant 0 : i32
    return %arg0, %c0_i32 : i32, i32
  }
  func.func @transform_1(%arg0: i32) -> (i32, i32) {
    %c0_i32 = arith.constant 0 : i32
    %c0_i32_0 = arith.constant 0 : i32
    %c0_i32_1 = arith.constant 0 : i32
    return %c0_i32, %c0_i32_0 : i32, i32
  }
  func.func @transform_2(%arg0: i32) -> (i32, i32) {
    %c0_i32 = arith.constant 0 : i32
    %c0_i32_0 = arith.constant 0 : i32
    %c0_i32_1 = arith.constant 0 : i32
    return %c0_i32, %c0_i32_0 : i32, i32
  }
  func.func @transform_3(%arg0: i32) -> (i32, i32, i32, i32) {
    %c0_i32 = arith.constant 0 : i32
    %c0_i32_0 = arith.constant 0 : i32
    %c0_i32_1 = arith.constant 0 : i32
    %c0_i32_2 = arith.constant 0 : i32
    %c0_i32_3 = arith.constant 0 : i32
    return %c0_i32, %c0_i32_0, %c0_i32_1, %c0_i32_2 : i32, i32, i32, i32
  }
  func.func @transform_4(%arg0: i32) -> (i32, i32, i32, i32) {
    %c0_i32 = arith.constant 0 : i32
    %c0_i32_0 = arith.constant 0 : i32
    %c0_i32_1 = arith.constant 0 : i32
    %c0_i32_2 = arith.constant 0 : i32
    %c0_i32_3 = arith.constant 0 : i32
    return %c0_i32, %c0_i32_0, %c0_i32_1, %c0_i32_2 : i32, i32, i32, i32
  }
  func.func @transform_5(%arg0: i32) -> (i32, i32) {
    %c0_i32 = arith.constant 0 : i32
    %c0_i32_0 = arith.constant 0 : i32
    %c0_i32_1 = arith.constant 0 : i32
    return %c0_i32, %c0_i32_0 : i32, i32
  }
  func.func @transform_6(%arg0: i32) -> (i32, i32) {
    %c0_i32 = arith.constant 0 : i32
    %c0_i32_0 = arith.constant 0 : i32
    %c0_i32_1 = arith.constant 0 : i32
    return %c0_i32, %c0_i32_0 : i32, i32
  }
  func.func @transform_7(%arg0: i32) -> (i32, i32) {
    %c0_i32 = arith.constant 0 : i32
    %c0_i32_0 = arith.constant 0 : i32
    %c0_i32_1 = arith.constant 0 : i32
    return %c0_i32, %c0_i32_0 : i32, i32
  }
  func.func @transform_8(%arg0: i32) -> (i32, i32) {
    %c0_i32 = arith.constant 0 : i32
    %c0_i32_0 = arith.constant 0 : i32
    return %arg0, %c0_i32 : i32, i32
  }
}

</mosaic_0001>

<llo_original>
// kernel: tpu_custom_call.1
$region0: #{tpu_custom_call.1}
  #allocation0 [shape = 'u32[]', space=smem, size = 0x4, offset = 0x4, fixed_abs, tag = 'smem constant byte address 0x4 - core index']
  #allocation1 [shape = 'u32[144,128]{1,0:T(1,128)}', space=vmem, size = 0x12000, scoped, tag = 'internal scratch']
  %s0 = inlined_call_operand.hbm [shape: bf16[8,128], index: 0, kind: input, shape index: {}]
  %s1 = inlined_call_operand.hbm [shape: bf16[128,128], index: 1, kind: input, shape index: {}]
  %s2 = inlined_call_operand.vmem [shape: f32[1,128], index: 2, kind: input, shape index: {}]
  %s3 = inlined_call_operand.hbm [shape: bf16[6,2,128,128], index: 3, kind: input, shape index: {}]
  %s4 = inlined_call_operand.vmem [shape: f32[6,2,1,128], index: 4, kind: input, shape index: {}]
  %s5 = inlined_call_operand.hbm [shape: bf16[128,512], index: 5, kind: input, shape index: {}]
  %s6 = inlined_call_operand.vmem [shape: f32[1,512], index: 6, kind: input, shape index: {}]
  %s7 = inlined_call_operand.vmem [shape: f32[1,512], index: 7, kind: input, shape index: {}]
  %s8 = inlined_call_operand.vmem [shape: f32[8,4], index: 8, kind: output, shape index: {}]
  %s9 = sld [smem:[#allocation0]]
  $region58: #{tpu_custom_call.1} parent=0
    _
  %s11 = ssub.s32 1, %s9
  %s12 = scalar_select 0, %s11, %s9
  $region1: #{tpu_custom_call.1} parent=0
    #allocation2 [shape = 'u8[2048]{0}', space=vmem, size = 0x800, scoped, tag = 'input window, operand 0, single buffered']
    #allocation3 [shape = 's32[1]{0}', space=sflag, size = 0x4, scoped, tag = 'scoped memory for tpu_custom_call.1']
    #allocation4 [shape = 'u8[32768]{0}', space=vmem, size = 0x8000, scoped, tag = 'input window, operand 1, single buffered']
    #allocation5 [shape = 's32[1]{0}', space=sflag, size = 0x4, scoped, tag = 'scoped memory for tpu_custom_call.1']
    #allocation6 [shape = 'u8[393216]{0}', space=vmem, size = 0x60000, scoped, tag = 'input window, operand 3, single buffered']
    #allocation7 [shape = 'u8[131072]{0}', space=vmem, size = 0x20000, scoped, tag = 'input window, operand 5, single buffered']
    #allocation8 [shape = 's32[1]{0}', space=sflag, size = 0x4, scoped, tag = 'scoped memory for tpu_custom_call.1']
    %13 = vsyncpa [#allocation3], 0
    %14 = vsyncpa [#allocation5], 0
    %15 = vsyncpa [#allocation8], 0
    // Predicated region
    $region2: #{tpu_custom_call.1} parent=1 // pred_check
      _
    $region3: #{tpu_custom_call.1} parent=1 // pred_check_branch
      %17 = sbr.rel (0) target = $region5
    $region4: #{tpu_custom_call.1} parent=1 // pred_region
      %s19 = ssub.s32 64, 64
      %20 = vsyncadd [#allocation3], %s19
      %s22 = sshll.u32 [#allocation2], 4
      %s23 = int_to_ptr.vmem [resolvable:$true] %s22
      %25 = dma.hbm_to_vmem [thread:$0]  %s0, 64, %s23, [#allocation3]
    $region5: #{tpu_custom_call.1} parent=1 // pred_fallthru
      _
    // Predicated region
    $region6: #{tpu_custom_call.1} parent=1 // pred_check
      _
    $region7: #{tpu_custom_call.1} parent=1 // pred_check_branch
      %27 = sbr.rel (0) target = $region9
    $region8: #{tpu_custom_call.1} parent=1 // pred_region
      %s29 = ssub.s32 1024, 1024
      %30 = vsyncadd [#allocation5], %s29
      %s31 = sshll.u32 [#allocation4], 4
      %s32 = int_to_ptr.vmem [resolvable:$true] %s31
      %37 = dma.hbm_to_vmem [thread:$0]  %s1, 1024, %s32, [#allocation5], 64, 64, 4
    $region9: #{tpu_custom_call.1} parent=1 // pred_fallthru
      _
    // Predicated region
    $region10: #{tpu_custom_call.1} parent=1 // pred_check
      _
    $region11: #{tpu_custom_call.1} parent=1 // pred_check_branch
      %39 = sbr.rel (0) target = $region13
    $region12: #{tpu_custom_call.1} parent=1 // pred_region
      _
    $region13: #{tpu_custom_call.1} parent=1 // pred_fallthru
      _
    // Predicated region
    $region14: #{tpu_custom_call.1} parent=1 // pred_check
      _
    $region15: #{tpu_custom_call.1} parent=1 // pred_check_branch
      %41 = sbr.rel (0) target = $region17
    $region16: #{tpu_custom_call.1} parent=1 // pred_region
      %s43 = ssub.s32 12288, 12288
      %44 = vsyncadd [#allocation5], %s43
      %s45 = sshll.u32 [#allocation6], 4
      %s46 = int_to_ptr.vmem [resolvable:$true] %s45
      %51 = dma.hbm_to_vmem [thread:$0]  %s3, 12288, %s46, [#allocation5], 64, 64, 4
    $region17: #{tpu_custom_call.1} parent=1 // pred_fallthru
      _
    // Predicated region
    $region18: #{tpu_custom_call.1} parent=1 // pred_check
      _
    $region19: #{tpu_custom_call.1} parent=1 // pred_check_branch
      %53 = sbr.rel (0) target = $region21
    $region20: #{tpu_custom_call.1} parent=1 // pred_region
      _
    $region21: #{tpu_custom_call.1} parent=1 // pred_fallthru
      _
    // Predicated region
    $region22: #{tpu_custom_call.1} parent=1 // pred_check
      _
    $region23: #{tpu_custom_call.1} parent=1 // pred_check_branch
      %55 = sbr.rel (0) target = $region25
    $region24: #{tpu_custom_call.1} parent=1 // pred_region
      %s57 = ssub.s32 4096, 4096
      %58 = vsyncadd [#allocation8], %s57
      %s59 = sshll.u32 [#allocation7], 4
      %s60 = int_to_ptr.vmem [resolvable:$true] %s59
      %65 = dma.hbm_to_vmem [thread:$0]  %s5, 4096, %s60, [#allocation8], 256, 256, 16
    $region25: #{tpu_custom_call.1} parent=1 // pred_fallthru
      _
    // Predicated region
    $region26: #{tpu_custom_call.1} parent=1 // pred_check
      _
    $region27: #{tpu_custom_call.1} parent=1 // pred_check_branch
      %67 = sbr.rel (0) target = $region29
    $region28: #{tpu_custom_call.1} parent=1 // pred_region
      _
    $region29: #{tpu_custom_call.1} parent=1 // pred_fallthru
      _
    // Predicated region
    $region30: #{tpu_custom_call.1} parent=1 // pred_check
      _
    $region31: #{tpu_custom_call.1} parent=1 // pred_check_branch
      %69 = sbr.rel (0) target = $region33
    $region32: #{tpu_custom_call.1} parent=1 // pred_region
      _
    $region33: #{tpu_custom_call.1} parent=1 // pred_fallthru
      _
    // Predicated region
    $region34: #{tpu_custom_call.1} parent=1 // pred_check
      _
    $region35: #{tpu_custom_call.1} parent=1 // pred_check_branch
      %71 = sbr.rel (0) target = $region37
    $region36: #{tpu_custom_call.1} parent=1 // pred_region
      %72 = dma.done [#allocation3], 64
    $region37: #{tpu_custom_call.1} parent=1 // pred_fallthru
      _
    // Predicated region
    $region38: #{tpu_custom_call.1} parent=1 // pred_check
      _
    $region39: #{tpu_custom_call.1} parent=1 // pred_check_branch
      %74 = sbr.rel (0) target = $region41
    $region40: #{tpu_custom_call.1} parent=1 // pred_region
      %75 = dma.done [#allocation5], 1024
    $region41: #{tpu_custom_call.1} parent=1 // pred_fallthru
      _
    // Predicated region
    $region42: #{tpu_custom_call.1} parent=1 // pred_check
      _
    $region43: #{tpu_custom_call.1} parent=1 // pred_check_branch
      %77 = sbr.rel (0) target = $region45
    $region44: #{tpu_custom_call.1} parent=1 // pred_region
      %78 = dma.done [#allocation5], 12288
    $region45: #{tpu_custom_call.1} parent=1 // pred_fallthru
      _
    // Predicated region
    $region46: #{tpu_custom_call.1} parent=1 // pred_check
      _
    $region47: #{tpu_custom_call.1} parent=1 // pred_check_branch
      %80 = sbr.rel (0) target = $region49
    $region48: #{tpu_custom_call.1} parent=1 // pred_region
      %81 = dma.done [#allocation8], 4096
    $region49: #{tpu_custom_call.1} parent=1 // pred_fallthru
      _
    %v83 = vld [vmem:[#allocation2] sm:$0xf]
    %v84 = vld [vmem:[#allocation4] sm:$0xf]
    %v85 = vld [vmem:[#allocation4 + $0x4] sm:$0xf]
    %v86 = vld [vmem:[#allocation4 + $0x8] sm:$0xf]
    %v87 = vld [vmem:[#allocation4 + $0xc] sm:$0xf]
    %v88 = vld [vmem:[#allocation4 + $0x10] sm:$0xf]
    %v89 = vld [vmem:[#allocation4 + $0x14] sm:$0xf]
    %v90 = vld [vmem:[#allocation4 + $0x18] sm:$0xf]
    %v91 = vld [vmem:[#allocation4 + $0x1c] sm:$0xf]
    %v92 = vld [vmem:[#allocation4 + $0x20] sm:$0xf]
    %v93 = vld [vmem:[#allocation4 + $0x24] sm:$0xf]
    %v94 = vld [vmem:[#allocation4 + $0x28] sm:$0xf]
    %v95 = vld [vmem:[#allocation4 + $0x2c] sm:$0xf]
    %v96 = vld [vmem:[#allocation4 + $0x30] sm:$0xf]
    %v97 = vld [vmem:[#allocation4 + $0x34] sm:$0xf]
    %v98 = vld [vmem:[#allocation4 + $0x38] sm:$0xf]
    %v99 = vld [vmem:[#allocation4 + $0x3c] sm:$0xf]
    %v100 = vld [vmem:[%s2] sm:$0x1]
    %v102 = vlaneseq
    %v103 = vshrl.u32 %v102, 7
    %v104 = vsub.s32 0, %v103
    %v105 = vrot.slane %v100, %v104
    %v123 = vunpack.c.l.b16 %v84
    %v124 = vunpack.c.l.b16 %v85
    %v125 = vunpack.c.l.b16 %v86
    %v126 = vunpack.c.l.b16 %v87
    %v127 = vunpack.c.l.b16 %v88
    %v128 = vunpack.c.l.b16 %v89
    %v129 = vunpack.c.l.b16 %v90
    %v130 = vunpack.c.l.b16 %v91
    %v131 = vunpack.c.l.b16 %v92
    %v132 = vunpack.c.l.b16 %v93
    %v133 = vunpack.c.l.b16 %v94
    %v134 = vunpack.c.l.b16 %v95
    %v135 = vunpack.c.l.b16 %v96
    %v136 = vunpack.c.l.b16 %v97
    %v137 = vunpack.c.l.b16 %v98
    %v138 = vunpack.c.l.b16 %v99
    %v139 = vpack.c.b16 %v124, %v123
    %v140 = vpack.c.b16 %v126, %v125
    %v141 = vpack.c.b16 %v128, %v127
    %v142 = vpack.c.b16 %v130, %v129
    %v143 = vpack.c.b16 %v132, %v131
    %v144 = vpack.c.b16 %v134, %v133
    %v145 = vpack.c.b16 %v136, %v135
    %v146 = vpack.c.b16 %v138, %v137
    %155 = vmatprep.subr.bf16.mxu0 0
    %156 = vmatpush1.bf16.msra.mxu0 %v139
    %157 = vmatprep.subr.bf16.mxu0 0
    %158 = vmatpush1.bf16.msra.mxu0 %v140
    %159 = vmatprep.subr.bf16.mxu0 0
    %160 = vmatpush1.bf16.msra.mxu0 %v141
    %161 = vmatprep.subr.bf16.mxu0 0
    %162 = vmatpush1.bf16.msra.mxu0 %v142
    %163 = vmatprep.subr.bf16.mxu0 0
    %164 = vmatpush1.bf16.msra.mxu0 %v143
    %165 = vmatprep.subr.bf16.mxu0 0
    %166 = vmatpush1.bf16.msra.mxu0 %v144
    %167 = vmatprep.subr.bf16.mxu0 0
    %168 = vmatpush1.bf16.msra.mxu0 %v145
    %169 = vmatprep.subr.bf16.mxu0 0
    %170 = vmatpush1.bf16.msra.mxu0 %v146
    %171 = vmatprep.subr.bf16.mxu0 0
    %172 = vmatpush1.bf16.msra.mxu0 0
    %173 = vmatprep.subr.bf16.mxu0 0
    %174 = vmatpush1.bf16.msra.mxu0 0
    %175 = vmatprep.subr.bf16.mxu0 0
    %176 = vmatpush1.bf16.msra.mxu0 0
    %177 = vmatprep.subr.bf16.mxu0 0
    %178 = vmatpush1.bf16.msra.mxu0 0
    %179 = vmatprep.subr.bf16.mxu0 0
    %180 = vmatpush1.bf16.msra.mxu0 0
    %181 = vmatprep.subr.bf16.mxu0 0
    %182 = vmatpush1.bf16.msra.mxu0 0
    %183 = vmatprep.subr.bf16.mxu0 0
    %184 = vmatpush1.bf16.msra.mxu0 0
    %185 = vmatprep.subr.bf16.mxu0 0
    %186 = vmatpush1.bf16.msra.mxu0 0
    %187 = vmatprep.mubr.bf16.mxu0 0
    %188 = vmatmul.mubr.bf16.gmra.mrb[0].mxu0 %v83
    %v189 = vpop.f32.mrb[0].mxu0
    %v190 = vadd.f32 %v105, %v189
    %v191 = vpop.f32.mrb[0].mxu0
    %v192 = vpop.f32.mrb[0].mxu0
    %v193 = vpop.f32.mrb[0].mxu0
    %194 = vdwg.mxu0
    %v195 = vmax.f32 %v190, 0.0
    %v196 = vpack.c.bf16 %v195, %v195
    %v197 = vld [vmem:[#allocation6] sm:$0xf]
    %v198 = vld [vmem:[#allocation6 + $0x4] sm:$0xf]
    %v199 = vld [vmem:[#allocation6 + $0x8] sm:$0xf]
    %v200 = vld [vmem:[#allocation6 + $0xc] sm:$0xf]
    %v201 = vld [vmem:[#allocation6 + $0x10] sm:$0xf]
    %v202 = vld [vmem:[#allocation6 + $0x14] sm:$0xf]
    %v203 = vld [vmem:[#allocation6 + $0x18] sm:$0xf]
    %v204 = vld [vmem:[#allocation6 + $0x1c] sm:$0xf]
    %v205 = vld [vmem:[#allocation6 + $0x20] sm:$0xf]
    %v206 = vld [vmem:[#allocation6 + $0x24] sm:$0xf]
    %v207 = vld [vmem:[#allocation6 + $0x28] sm:$0xf]
    %v208 = vld [vmem:[#allocation6 + $0x2c] sm:$0xf]
    %v209 = vld [vmem:[#allocation6 + $0x30] sm:$0xf]
    %v210 = vld [vmem:[#allocation6 + $0x34] sm:$0xf]
    %v211 = vld [vmem:[#allocation6 + $0x38] sm:$0xf]
    %v212 = vld [vmem:[#allocation6 + $0x3c] sm:$0xf]
    %v213 = vld [vmem:[%s4] sm:$0x1]
    %v215 = vlaneseq
    %v216 = vshrl.u32 %v215, 7
    %v217 = vsub.s32 0, %v216
    %v218 = vrot.slane %v213, %v217
    %v236 = vunpack.c.l.b16 %v197
    %v237 = vunpack.c.l.b16 %v198
    %v238 = vunpack.c.l.b16 %v199
    %v239 = vunpack.c.l.b16 %v200
    %v240 = vunpack.c.l.b16 %v201
    %v241 = vunpack.c.l.b16 %v202
    %v242 = vunpack.c.l.b16 %v203
    %v243 = vunpack.c.l.b16 %v204
    %v244 = vunpack.c.l.b16 %v205
    %v245 = vunpack.c.l.b16 %v206
    %v246 = vunpack.c.l.b16 %v207
    %v247 = vunpack.c.l.b16 %v208
    %v248 = vunpack.c.l.b16 %v209
    %v249 = vunpack.c.l.b16 %v210
    %v250 = vunpack.c.l.b16 %v211
    %v251 = vunpack.c.l.b16 %v212
    %v252 = vpack.c.b16 %v237, %v236
    %v253 = vpack.c.b16 %v239, %v238
    %v254 = vpack.c.b16 %v241, %v240
    %v255 = vpack.c.b16 %v243, %v242
    %v256 = vpack.c.b16 %v245, %v244
    %v257 = vpack.c.b16 %v247, %v246
    %v258 = vpack.c.b16 %v249, %v248
    %v259 = vpack.c.b16 %v251, %v250
    %268 = vmatprep.subr.bf16.mxu0 0
    %269 = vmatpush1.bf16.msra.mxu0 %v252
    %270 = vmatprep.subr.bf16.mxu0 0
    %271 = vmatpush1.bf16.msra.mxu0 %v253
    %272 = vmatprep.subr.bf16.mxu0 0
    %273 = vmatpush1.bf16.msra.mxu0 %v254
    %274 = vmatprep.subr.bf16.mxu0 0
    %275 = vmatpush1.bf16.msra.mxu0 %v255
    %276 = vmatprep.subr.bf16.mxu0 0
    %277 = vmatpush1.bf16.msra.mxu0 %v256
    %278 = vmatprep.subr.bf16.mxu0 0
    %279 = vmatpush1.bf16.msra.mxu0 %v257
    %280 = vmatprep.subr.bf16.mxu0 0
    %281 = vmatpush1.bf16.msra.mxu0 %v258
    %282 = vmatprep.subr.bf16.mxu0 0
    %283 = vmatpush1.bf16.msra.mxu0 %v259
    %284 = vmatprep.subr.bf16.mxu0 0
    %285 = vmatpush1.bf16.msra.mxu0 0
    %286 = vmatprep.subr.bf16.mxu0 0
    %287 = vmatpush1.bf16.msra.mxu0 0
    %288 = vmatprep.subr.bf16.mxu0 0
    %289 = vmatpush1.bf16.msra.mxu0 0
    %290 = vmatprep.subr.bf16.mxu0 0
    %291 = vmatpush1.bf16.msra.mxu0 0
    %292 = vmatprep.subr.bf16.mxu0 0
    %293 = vmatpush1.bf16.msra.mxu0 0
    %294 = vmatprep.subr.bf16.mxu0 0
    %295 = vmatpush1.bf16.msra.mxu0 0
    %296 = vmatprep.subr.bf16.mxu0 0
    %297 = vmatpush1.bf16.msra.mxu0 0
    %298 = vmatprep.subr.bf16.mxu0 0
    %299 = vmatpush1.bf16.msra.mxu0 0
    %300 = vmatprep.mubr.bf16.mxu0 0
    %301 = vmatmul.mubr.bf16.gmra.mrb[0].mxu0 %v196
    %v302 = vpop.f32.mrb[0].mxu0
    %v303 = vadd.f32 %v218, %v302
    %v304 = vpop.f32.mrb[0].mxu0
    %v305 = vpop.f32.mrb[0].mxu0
    %v306 = vpop.f32.mrb[0].mxu0
    %307 = vdwg.mxu0
    %v308 = vmax.f32 %v303, 0.0
    %v309 = vpack.c.bf16 %v308, %v308
    %s310 = scalar_lea.vmem [#allocation6], 64
    %v311 = vld [vmem:[%s310] sm:$0xf]
    %v312 = vld [vmem:[%s310 + $0x4] sm:$0xf]
    %v313 = vld [vmem:[%s310 + $0x8] sm:$0xf]
    %v314 = vld [vmem:[%s310 + $0xc] sm:$0xf]
    %v315 = vld [vmem:[%s310 + $0x10] sm:$0xf]
    %v316 = vld [vmem:[%s310 + $0x14] sm:$0xf]
    %v317 = vld [vmem:[%s310 + $0x18] sm:$0xf]
    %v318 = vld [vmem:[%s310 + $0x1c] sm:$0xf]
    %v319 = vld [vmem:[%s310 + $0x20] sm:$0xf]
    %v320 = vld [vmem:[%s310 + $0x24] sm:$0xf]
    %v321 = vld [vmem:[%s310 + $0x28] sm:$0xf]
    %v322 = vld [vmem:[%s310 + $0x2c] sm:$0xf]
    %v323 = vld [vmem:[%s310 + $0x30] sm:$0xf]
    %v324 = vld [vmem:[%s310 + $0x34] sm:$0xf]
    %v325 = vld [vmem:[%s310 + $0x38] sm:$0xf]
    %v326 = vld [vmem:[%s310 + $0x3c] sm:$0xf]
    %s327 = scalar_lea.vmem %s4, 1
    %v328 = vld [vmem:[%s327] sm:$0x1]
    %v330 = vlaneseq
    %v331 = vshrl.u32 %v330, 7
    %v332 = vsub.s32 0, %v331
    %v333 = vrot.slane %v328, %v332
    %v351 = vunpack.c.l.b16 %v311
    %v352 = vunpack.c.l.b16 %v312
    %v353 = vunpack.c.l.b16 %v313
    %v354 = vunpack.c.l.b16 %v314
    %v355 = vunpack.c.l.b16 %v315
    %v356 = vunpack.c.l.b16 %v316
    %v357 = vunpack.c.l.b16 %v317
    %v358 = vunpack.c.l.b16 %v318
    %v359 = vunpack.c.l.b16 %v319
    %v360 = vunpack.c.l.b16 %v320
    %v361 = vunpack.c.l.b16 %v321
    %v362 = vunpack.c.l.b16 %v322
    %v363 = vunpack.c.l.b16 %v323
    %v364 = vunpack.c.l.b16 %v324
    %v365 = vunpack.c.l.b16 %v325
    %v366 = vunpack.c.l.b16 %v326
    %v367 = vpack.c.b16 %v352, %v351
    %v368 = vpack.c.b16 %v354, %v353
    %v369 = vpack.c.b16 %v356, %v355
    %v370 = vpack.c.b16 %v358, %v357
    %v371 = vpack.c.b16 %v360, %v359
    %v372 = vpack.c.b16 %v362, %v361
    %v373 = vpack.c.b16 %v364, %v363
    %v374 = vpack.c.b16 %v366, %v365
    %383 = vmatprep.subr.bf16.mxu0 0
    %384 = vmatpush1.bf16.msra.mxu0 %v367
    %385 = vmatprep.subr.bf16.mxu0 0
    %386 = vmatpush1.bf16.msra.mxu0 %v368
    %387 = vmatprep.subr.bf16.mxu0 0
    %388 = vmatpush1.bf16.msra.mxu0 %v369
    %389 = vmatprep.subr.bf16.mxu0 0
    %390 = vmatpush1.bf16.msra.mxu0 %v370
    %391 = vmatprep.subr.bf16.mxu0 0
    %392 = vmatpush1.bf16.msra.mxu0 %v371
    %393 = vmatprep.subr.bf16.mxu0 0
    %394 = vmatpush1.bf16.msra.mxu0 %v372
    %395 = vmatprep.subr.bf16.mxu0 0
    %396 = vmatpush1.bf16.msra.mxu0 %v373
    %397 = vmatprep.subr.bf16.mxu0 0
    %398 = vmatpush1.bf16.msra.mxu0 %v374
    %399 = vmatprep.subr.bf16.mxu0 0
    %400 = vmatpush1.bf16.msra.mxu0 0
    %401 = vmatprep.subr.bf16.mxu0 0
    %402 = vmatpush1.bf16.msra.mxu0 0
    %403 = vmatprep.subr.bf16.mxu0 0
    %404 = vmatpush1.bf16.msra.mxu0 0
    %405 = vmatprep.subr.bf16.mxu0 0
    %406 = vmatpush1.bf16.msra.mxu0 0
    %407 = vmatprep.subr.bf16.mxu0 0
    %408 = vmatpush1.bf16.msra.mxu0 0
    %409 = vmatprep.subr.bf16.mxu0 0
    %410 = vmatpush1.bf16.msra.mxu0 0
    %411 = vmatprep.subr.bf16.mxu0 0
    %412 = vmatpush1.bf16.msra.mxu0 0
    %413 = vmatprep.subr.bf16.mxu0 0
    %414 = vmatpush1.bf16.msra.mxu0 0
    %415 = vmatprep.mubr.bf16.mxu0 0
    %416 = vmatmul.mubr.bf16.gmra.mrb[0].mxu0 %v309
    %v417 = vpop.f32.mrb[0].mxu0
    %v418 = vadd.f32 %v333, %v417
    %v419 = vpop.f32.mrb[0].mxu0
    %v420 = vpop.f32.mrb[0].mxu0
    %v421 = vpop.f32.mrb[0].mxu0
    %422 = vdwg.mxu0
    %v423 = vadd.f32 %v418, %v195
    %v424 = vmax.f32 %v423, 0.0
    %v425 = vpack.c.bf16 %v424, %v424
    %s426 = scalar_lea.vmem [#allocation6], 128
    %v427 = vld [vmem:[%s426] sm:$0xf]
    %v428 = vld [vmem:[%s426 + $0x4] sm:$0xf]
    %v429 = vld [vmem:[%s426 + $0x8] sm:$0xf]
    %v430 = vld [vmem:[%s426 + $0xc] sm:$0xf]
    %v431 = vld [vmem:[%s426 + $0x10] sm:$0xf]
    %v432 = vld [vmem:[%s426 + $0x14] sm:$0xf]
    %v433 = vld [vmem:[%s426 + $0x18] sm:$0xf]
    %v434 = vld [vmem:[%s426 + $0x1c] sm:$0xf]
    %v435 = vld [vmem:[%s426 + $0x20] sm:$0xf]
    %v436 = vld [vmem:[%s426 + $0x24] sm:$0xf]
    %v437 = vld [vmem:[%s426 + $0x28] sm:$0xf]
    %v438 = vld [vmem:[%s426 + $0x2c] sm:$0xf]
    %v439 = vld [vmem:[%s426 + $0x30] sm:$0xf]
    %v440 = vld [vmem:[%s426 + $0x34] sm:$0xf]
    %v441 = vld [vmem:[%s426 + $0x38] sm:$0xf]
    %v442 = vld [vmem:[%s426 + $0x3c] sm:$0xf]
    %s443 = scalar_lea.vmem %s4, 2
    %v444 = vld [vmem:[%s443] sm:$0x1]
    %v446 = vlaneseq
    %v447 = vshrl.u32 %v446, 7
    %v448 = vsub.s32 0, %v447
    %v449 = vrot.slane %v444, %v448
    %v467 = vunpack.c.l.b16 %v427
    %v468 = vunpack.c.l.b16 %v428
    %v469 = vunpack.c.l.b16 %v429
    %v470 = vunpack.c.l.b16 %v430
    %v471 = vunpack.c.l.b16 %v431
    %v472 = vunpack.c.l.b16 %v432
    %v473 = vunpack.c.l.b16 %v433
    %v474 = vunpack.c.l.b16 %v434
    %v475 = vunpack.c.l.b16 %v435
    %v476 = vunpack.c.l.b16 %v436
    %v477 = vunpack.c.l.b16 %v437
    %v478 = vunpack.c.l.b16 %v438
    %v479 = vunpack.c.l.b16 %v439
    %v480 = vunpack.c.l.b16 %v440
    %v481 = vunpack.c.l.b16 %v441
    %v482 = vunpack.c.l.b16 %v442
    %v483 = vpack.c.b16 %v468, %v467
    %v484 = vpack.c.b16 %v470, %v469
    %v485 = vpack.c.b16 %v472, %v471
    %v486 = vpack.c.b16 %v474, %v473
    %v487 = vpack.c.b16 %v476, %v475
    %v488 = vpack.c.b16 %v478, %v477
    %v489 = vpack.c.b16 %v480, %v479
    %v490 = vpack.c.b16 %v482, %v481
    %499 = vmatprep.subr.bf16.mxu0 0
    %500 = vmatpush1.bf16.msra.mxu0 %v483
    %501 = vmatprep.subr.bf16.mxu0 0
    %502 = vmatpush1.bf16.msra.mxu0 %v484
    %503 = vmatprep.subr.bf16.mxu0 0
    %504 = vmatpush1.bf16.msra.mxu0 %v485
    %505 = vmatprep.subr.bf16.mxu0 0
    %506 = vmatpush1.bf16.msra.mxu0 %v486
    %507 = vmatprep.subr.bf16.mxu0 0
    %508 = vmatpush1.bf16.msra.mxu0 %v487
    %509 = vmatprep.subr.bf16.mxu0 0
    %510 = vmatpush1.bf16.msra.mxu0 %v488
    %511 = vmatprep.subr.bf16.mxu0 0
    %512 = vmatpush1.bf16.msra.mxu0 %v489
    %513 = vmatprep.subr.bf16.mxu0 0
    %514 = vmatpush1.bf16.msra.mxu0 %v490
    %515 = vmatprep.subr.bf16.mxu0 0
    %516 = vmatpush1.bf16.msra.mxu0 0
    %517 = vmatprep.subr.bf16.mxu0 0
    %518 = vmatpush1.bf16.msra.mxu0 0
    %519 = vmatprep.subr.bf16.mxu0 0
    %520 = vmatpush1.bf16.msra.mxu0 0
    %521 = vmatprep.subr.bf16.mxu0 0
    %522 = vmatpush1.bf16.msra.mxu0 0
    %523 = vmatprep.subr.bf16.mxu0 0
    %524 = vmatpush1.bf16.msra.mxu0 0
    %525 = vmatprep.subr.bf16.mxu0 0
    %526 = vmatpush1.bf16.msra.mxu0 0
    %527 = vmatprep.subr.bf16.mxu0 0
    %528 = vmatpush1.bf16.msra.mxu0 0
    %529 = vmatprep.subr.bf16.mxu0 0
    %530 = vmatpush1.bf16.msra.mxu0 0
    %531 = vmatprep.mubr.bf16.mxu0 0
    %532 = vmatmul.mubr.bf16.gmra.mrb[0].mxu0 %v425
    %v533 = vpop.f32.mrb[0].mxu0
    %v534 = vadd.f32 %v449, %v533
    %v535 = vpop.f32.mrb[0].mxu0
    %v536 = vpop.f32.mrb[0].mxu0
    %v537 = vpop.f32.mrb[0].mxu0
    %538 = vdwg.mxu0
    %v539 = vmax.f32 %v534, 0.0
    %v540 = vpack.c.bf16 %v539, %v539
    %s541 = scalar_lea.vmem [#allocation6], 192
    %v542 = vld [vmem:[%s541] sm:$0xf]
    %v543 = vld [vmem:[%s541 + $0x4] sm:$0xf]
    %v544 = vld [vmem:[%s541 + $0x8] sm:$0xf]
    %v545 = vld [vmem:[%s541 + $0xc] sm:$0xf]
    %v546 = vld [vmem:[%s541 + $0x10] sm:$0xf]
    %v547 = vld [vmem:[%s541 + $0x14] sm:$0xf]
    %v548 = vld [vmem:[%s541 + $0x18] sm:$0xf]
    %v549 = vld [vmem:[%s541 + $0x1c] sm:$0xf]
    %v550 = vld [vmem:[%s541 + $0x20] sm:$0xf]
    %v551 = vld [vmem:[%s541 + $0x24] sm:$0xf]
    %v552 = vld [vmem:[%s541 + $0x28] sm:$0xf]
    %v553 = vld [vmem:[%s541 + $0x2c] sm:$0xf]
    %v554 = vld [vmem:[%s541 + $0x30] sm:$0xf]
    %v555 = vld [vmem:[%s541 + $0x34] sm:$0xf]
    %v556 = vld [vmem:[%s541 + $0x38] sm:$0xf]
    %v557 = vld [vmem:[%s541 + $0x3c] sm:$0xf]
    %s558 = scalar_lea.vmem %s4, 3
    %v559 = vld [vmem:[%s558] sm:$0x1]
    %v561 = vlaneseq
    %v562 = vshrl.u32 %v561, 7
    %v563 = vsub.s32 0, %v562
    %v564 = vrot.slane %v559, %v563
    %v582 = vunpack.c.l.b16 %v542
    %v583 = vunpack.c.l.b16 %v543
    %v584 = vunpack.c.l.b16 %v544
    %v585 = vunpack.c.l.b16 %v545
    %v586 = vunpack.c.l.b16 %v546
    %v587 = vunpack.c.l.b16 %v547
    %v588 = vunpack.c.l.b16 %v548
    %v589 = vunpack.c.l.b16 %v549
    %v590 = vunpack.c.l.b16 %v550
    %v591 = vunpack.c.l.b16 %v551
    %v592 = vunpack.c.l.b16 %v552
    %v593 = vunpack.c.l.b16 %v553
    %v594 = vunpack.c.l.b16 %v554
    %v595 = vunpack.c.l.b16 %v555
    %v596 = vunpack.c.l.b16 %v556
    %v597 = vunpack.c.l.b16 %v557
    %v598 = vpack.c.b16 %v583, %v582
    %v599 = vpack.c.b16 %v585, %v584
    %v600 = vpack.c.b16 %v587, %v586
    %v601 = vpack.c.b16 %v589, %v588
    %v602 = vpack.c.b16 %v591, %v590
    %v603 = vpack.c.b16 %v593, %v592
    %v604 = vpack.c.b16 %v595, %v594
    %v605 = vpack.c.b16 %v597, %v596
    %614 = vmatprep.subr.bf16.mxu0 0
    %615 = vmatpush1.bf16.msra.mxu0 %v598
    %616 = vmatprep.subr.bf16.mxu0 0
    %617 = vmatpush1.bf16.msra.mxu0 %v599
    %618 = vmatprep.subr.bf16.mxu0 0
    %619 = vmatpush1.bf16.msra.mxu0 %v600
    %620 = vmatprep.subr.bf16.mxu0 0
    %621 = vmatpush1.bf16.msra.mxu0 %v601
    %622 = vmatprep.subr.bf16.mxu0 0
    %623 = vmatpush1.bf16.msra.mxu0 %v602
    %624 = vmatprep.subr.bf16.mxu0 0
    %625 = vmatpush1.bf16.msra.mxu0 %v603
    %626 = vmatprep.subr.bf16.mxu0 0
    %627 = vmatpush1.bf16.msra.mxu0 %v604
    %628 = vmatprep.subr.bf16.mxu0 0
    %629 = vmatpush1.bf16.msra.mxu0 %v605
    %630 = vmatprep.subr.bf16.mxu0 0
    %631 = vmatpush1.bf16.msra.mxu0 0
    %632 = vmatprep.subr.bf16.mxu0 0
    %633 = vmatpush1.bf16.msra.mxu0 0
    %634 = vmatprep.subr.bf16.mxu0 0
    %635 = vmatpush1.bf16.msra.mxu0 0
    %636 = vmatprep.subr.bf16.mxu0 0
    %637 = vmatpush1.bf16.msra.mxu0 0
    %638 = vmatprep.subr.bf16.mxu0 0
    %639 = vmatpush1.bf16.msra.mxu0 0
    %640 = vmatprep.subr.bf16.mxu0 0
    %641 = vmatpush1.bf16.msra.mxu0 0
    %642 = vmatprep.subr.bf16.mxu0 0
    %643 = vmatpush1.bf16.msra.mxu0 0
    %644 = vmatprep.subr.bf16.mxu0 0
    %645 = vmatpush1.bf16.msra.mxu0 0
    %646 = vmatprep.mubr.bf16.mxu0 0
    %647 = vmatmul.mubr.bf16.gmra.mrb[0].mxu0 %v540
    %v648 = vpop.f32.mrb[0].mxu0
    %v649 = vadd.f32 %v564, %v648
    %v650 = vpop.f32.mrb[0].mxu0
    %v651 = vpop.f32.mrb[0].mxu0
    %v652 = vpop.f32.mrb[0].mxu0
    %653 = vdwg.mxu0
    %v654 = vadd.f32 %v649, %v424
    %v655 = vmax.f32 %v654, 0.0
    %v656 = vpack.c.bf16 %v655, %v655
    %s657 = scalar_lea.vmem [#allocation6], 256
    %v658 = vld [vmem:[%s657] sm:$0xf]
    %v659 = vld [vmem:[%s657 + $0x4] sm:$0xf]
    %v660 = vld [vmem:[%s657 + $0x8] sm:$0xf]
    %v661 = vld [vmem:[%s657 + $0xc] sm:$0xf]
    %v662 = vld [vmem:[%s657 + $0x10] sm:$0xf]
    %v663 = vld [vmem:[%s657 + $0x14] sm:$0xf]
    %v664 = vld [vmem:[%s657 + $0x18] sm:$0xf]
    %v665 = vld [vmem:[%s657 + $0x1c] sm:$0xf]
    %v666 = vld [vmem:[%s657 + $0x20] sm:$0xf]
    %v667 = vld [vmem:[%s657 + $0x24] sm:$0xf]
    %v668 = vld [vmem:[%s657 + $0x28] sm:$0xf]
    %v669 = vld [vmem:[%s657 + $0x2c] sm:$0xf]
    %v670 = vld [vmem:[%s657 + $0x30] sm:$0xf]
    %v671 = vld [vmem:[%s657 + $0x34] sm:$0xf]
    %v672 = vld [vmem:[%s657 + $0x38] sm:$0xf]
    %v673 = vld [vmem:[%s657 + $0x3c] sm:$0xf]
    %s674 = scalar_lea.vmem %s4, 4
    %v675 = vld [vmem:[%s674] sm:$0x1]
    %v677 = vlaneseq
    %v678 = vshrl.u32 %v677, 7
    %v679 = vsub.s32 0, %v678
    %v680 = vrot.slane %v675, %v679
    %v698 = vunpack.c.l.b16 %v658
    %v699 = vunpack.c.l.b16 %v659
    %v700 = vunpack.c.l.b16 %v660
    %v701 = vunpack.c.l.b16 %v661
    %v702 = vunpack.c.l.b16 %v662
    %v703 = vunpack.c.l.b16 %v663
    %v704 = vunpack.c.l.b16 %v664
    %v705 = vunpack.c.l.b16 %v665
    %v706 = vunpack.c.l.b16 %v666
    %v707 = vunpack.c.l.b16 %v667
    %v708 = vunpack.c.l.b16 %v668
    %v709 = vunpack.c.l.b16 %v669
    %v710 = vunpack.c.l.b16 %v670
    %v711 = vunpack.c.l.b16 %v671
    %v712 = vunpack.c.l.b16 %v672
    %v713 = vunpack.c.l.b16 %v673
    %v714 = vpack.c.b16 %v699, %v698
    %v715 = vpack.c.b16 %v701, %v700
    %v716 = vpack.c.b16 %v703, %v702
    %v717 = vpack.c.b16 %v705, %v704
    %v718 = vpack.c.b16 %v707, %v706
    %v719 = vpack.c.b16 %v709, %v708
    %v720 = vpack.c.b16 %v711, %v710
    %v721 = vpack.c.b16 %v713, %v712
    %730 = vmatprep.subr.bf16.mxu0 0
    %731 = vmatpush1.bf16.msra.mxu0 %v714
    %732 = vmatprep.subr.bf16.mxu0 0
    %733 = vmatpush1.bf16.msra.mxu0 %v715
    %734 = vmatprep.subr.bf16.mxu0 0
    %735 = vmatpush1.bf16.msra.mxu0 %v716
    %736 = vmatprep.subr.bf16.mxu0 0
    %737 = vmatpush1.bf16.msra.mxu0 %v717
    %738 = vmatprep.subr.bf16.mxu0 0
    %739 = vmatpush1.bf16.msra.mxu0 %v718
    %740 = vmatprep.subr.bf16.mxu0 0
    %741 = vmatpush1.bf16.msra.mxu0 %v719
    %742 = vmatprep.subr.bf16.mxu0 0
    %743 = vmatpush1.bf16.msra.mxu0 %v720
    %744 = vmatprep.subr.bf16.mxu0 0
    %745 = vmatpush1.bf16.msra.mxu0 %v721
    %746 = vmatprep.subr.bf16.mxu0 0
    %747 = vmatpush1.bf16.msra.mxu0 0
    %748 = vmatprep.subr.bf16.mxu0 0
    %749 = vmatpush1.bf16.msra.mxu0 0
    %750 = vmatprep.subr.bf16.mxu0 0
    %751 = vmatpush1.bf16.msra.mxu0 0
    %752 = vmatprep.subr.bf16.mxu0 0
    %753 = vmatpush1.bf16.msra.mxu0 0
    %754 = vmatprep.subr.bf16.mxu0 0
    %755 = vmatpush1.bf16.msra.mxu0 0
    %756 = vmatprep.subr.bf16.mxu0 0
    %757 = vmatpush1.bf16.msra.mxu0 0
    %758 = vmatprep.subr.bf16.mxu0 0
    %759 = vmatpush1.bf16.msra.mxu0 0
    %760 = vmatprep.subr.bf16.mxu0 0
    %761 = vmatpush1.bf16.msra.mxu0 0
    %762 = vmatprep.mubr.bf16.mxu0 0
    %763 = vmatmul.mubr.bf16.gmra.mrb[0].mxu0 %v656
    %v764 = vpop.f32.mrb[0].mxu0
    %v765 = vadd.f32 %v680, %v764
    %v766 = vpop.f32.mrb[0].mxu0
    %v767 = vpop.f32.mrb[0].mxu0
    %v768 = vpop.f32.mrb[0].mxu0
    %769 = vdwg.mxu0
    %v770 = vmax.f32 %v765, 0.0
    %v771 = vpack.c.bf16 %v770, %v770
    %s772 = scalar_lea.vmem [#allocation6], 320
    %v773 = vld [vmem:[%s772] sm:$0xf]
    %v774 = vld [vmem:[%s772 + $0x4] sm:$0xf]
    %v775 = vld [vmem:[%s772 + $0x8] sm:$0xf]
    %v776 = vld [vmem:[%s772 + $0xc] sm:$0xf]
    %v777 = vld [vmem:[%s772 + $0x10] sm:$0xf]
    %v778 = vld [vmem:[%s772 + $0x14] sm:$0xf]
    %v779 = vld [vmem:[%s772 + $0x18] sm:$0xf]
    %v780 = vld [vmem:[%s772 + $0x1c] sm:$0xf]
    %v781 = vld [vmem:[%s772 + $0x20] sm:$0xf]
    %v782 = vld [vmem:[%s772 + $0x24] sm:$0xf]
    %v783 = vld [vmem:[%s772 + $0x28] sm:$0xf]
    %v784 = vld [vmem:[%s772 + $0x2c] sm:$0xf]
    %v785 = vld [vmem:[%s772 + $0x30] sm:$0xf]
    %v786 = vld [vmem:[%s772 + $0x34] sm:$0xf]
    %v787 = vld [vmem:[%s772 + $0x38] sm:$0xf]
    %v788 = vld [vmem:[%s772 + $0x3c] sm:$0xf]
    %s789 = scalar_lea.vmem %s4, 5
    %v790 = vld [vmem:[%s789] sm:$0x1]
    %v792 = vlaneseq
    %v793 = vshrl.u32 %v792, 7
    %v794 = vsub.s32 0, %v793
    %v795 = vrot.slane %v790, %v794
    %v813 = vunpack.c.l.b16 %v773
    %v814 = vunpack.c.l.b16 %v774
    %v815 = vunpack.c.l.b16 %v775
    %v816 = vunpack.c.l.b16 %v776
    %v817 = vunpack.c.l.b16 %v777
    %v818 = vunpack.c.l.b16 %v778
    %v819 = vunpack.c.l.b16 %v779
    %v820 = vunpack.c.l.b16 %v780
    %v821 = vunpack.c.l.b16 %v781
    %v822 = vunpack.c.l.b16 %v782
    %v823 = vunpack.c.l.b16 %v783
    %v824 = vunpack.c.l.b16 %v784
    %v825 = vunpack.c.l.b16 %v785
    %v826 = vunpack.c.l.b16 %v786
    %v827 = vunpack.c.l.b16 %v787
    %v828 = vunpack.c.l.b16 %v788
    %v829 = vpack.c.b16 %v814, %v813
    %v830 = vpack.c.b16 %v816, %v815
    %v831 = vpack.c.b16 %v818, %v817
    %v832 = vpack.c.b16 %v820, %v819
    %v833 = vpack.c.b16 %v822, %v821
    %v834 = vpack.c.b16 %v824, %v823
    %v835 = vpack.c.b16 %v826, %v825
    %v836 = vpack.c.b16 %v828, %v827
    %845 = vmatprep.subr.bf16.mxu0 0
    %846 = vmatpush1.bf16.msra.mxu0 %v829
    %847 = vmatprep.subr.bf16.mxu0 0
    %848 = vmatpush1.bf16.msra.mxu0 %v830
    %849 = vmatprep.subr.bf16.mxu0 0
    %850 = vmatpush1.bf16.msra.mxu0 %v831
    %851 = vmatprep.subr.bf16.mxu0 0
    %852 = vmatpush1.bf16.msra.mxu0 %v832
    %853 = vmatprep.subr.bf16.mxu0 0
    %854 = vmatpush1.bf16.msra.mxu0 %v833
    %855 = vmatprep.subr.bf16.mxu0 0
    %856 = vmatpush1.bf16.msra.mxu0 %v834
    %857 = vmatprep.subr.bf16.mxu0 0
    %858 = vmatpush1.bf16.msra.mxu0 %v835
    %859 = vmatprep.subr.bf16.mxu0 0
    %860 = vmatpush1.bf16.msra.mxu0 %v836
    %861 = vmatprep.subr.bf16.mxu0 0
    %862 = vmatpush1.bf16.msra.mxu0 0
    %863 = vmatprep.subr.bf16.mxu0 0
    %864 = vmatpush1.bf16.msra.mxu0 0
    %865 = vmatprep.subr.bf16.mxu0 0
    %866 = vmatpush1.bf16.msra.mxu0 0
    %867 = vmatprep.subr.bf16.mxu0 0
    %868 = vmatpush1.bf16.msra.mxu0 0
    %869 = vmatprep.subr.bf16.mxu0 0
    %870 = vmatpush1.bf16.msra.mxu0 0
    %871 = vmatprep.subr.bf16.mxu0 0
    %872 = vmatpush1.bf16.msra.mxu0 0
    %873 = vmatprep.subr.bf16.mxu0 0
    %874 = vmatpush1.bf16.msra.mxu0 0
    %875 = vmatprep.subr.bf16.mxu0 0
    %876 = vmatpush1.bf16.msra.mxu0 0
    %877 = vmatprep.mubr.bf16.mxu0 0
    %878 = vmatmul.mubr.bf16.gmra.mrb[0].mxu0 %v771
    %v879 = vpop.f32.mrb[0].mxu0
    %v880 = vadd.f32 %v795, %v879
    %v881 = vpop.f32.mrb[0].mxu0
    %v882 = vpop.f32.mrb[0].mxu0
    %v883 = vpop.f32.mrb[0].mxu0
    %884 = vdwg.mxu0
    %v885 = vadd.f32 %v880, %v655
    %v886 = vmax.f32 %v885, 0.0
    %v887 = vpack.c.bf16 %v886, %v886
    %s888 = scalar_lea.vmem [#allocation6], 384
    %v889 = vld [vmem:[%s888] sm:$0xf]
    %v890 = vld [vmem:[%s888 + $0x4] sm:$0xf]
    %v891 = vld [vmem:[%s888 + $0x8] sm:$0xf]
    %v892 = vld [vmem:[%s888 + $0xc] sm:$0xf]
    %v893 = vld [vmem:[%s888 + $0x10] sm:$0xf]
    %v894 = vld [vmem:[%s888 + $0x14] sm:$0xf]
    %v895 = vld [vmem:[%s888 + $0x18] sm:$0xf]
    %v896 = vld [vmem:[%s888 + $0x1c] sm:$0xf]
    %v897 = vld [vmem:[%s888 + $0x20] sm:$0xf]
    %v898 = vld [vmem:[%s888 + $0x24] sm:$0xf]
    %v899 = vld [vmem:[%s888 + $0x28] sm:$0xf]
    %v900 = vld [vmem:[%s888 + $0x2c] sm:$0xf]
    %v901 = vld [vmem:[%s888 + $0x30] sm:$0xf]
    %v902 = vld [vmem:[%s888 + $0x34] sm:$0xf]
    %v903 = vld [vmem:[%s888 + $0x38] sm:$0xf]
    %v904 = vld [vmem:[%s888 + $0x3c] sm:$0xf]
    %s905 = scalar_lea.vmem %s4, 6
    %v906 = vld [vmem:[%s905] sm:$0x1]
    %v908 = vlaneseq
    %v909 = vshrl.u32 %v908, 7
    %v910 = vsub.s32 0, %v909
    %v911 = vrot.slane %v906, %v910
    %v929 = vunpack.c.l.b16 %v889
    %v930 = vunpack.c.l.b16 %v890
    %v931 = vunpack.c.l.b16 %v891
    %v932 = vunpack.c.l.b16 %v892
    %v933 = vunpack.c.l.b16 %v893
    %v934 = vunpack.c.l.b16 %v894
    %v935 = vunpack.c.l.b16 %v895
    %v936 = vunpack.c.l.b16 %v896
    %v937 = vunpack.c.l.b16 %v897
    %v938 = vunpack.c.l.b16 %v898
    %v939 = vunpack.c.l.b16 %v899
    %v940 = vunpack.c.l.b16 %v900
    %v941 = vunpack.c.l.b16 %v901
    %v942 = vunpack.c.l.b16 %v902
    %v943 = vunpack.c.l.b16 %v903
    %v944 = vunpack.c.l.b16 %v904
    %v945 = vpack.c.b16 %v930, %v929
    %v946 = vpack.c.b16 %v932, %v931
    %v947 = vpack.c.b16 %v934, %v933
    %v948 = vpack.c.b16 %v936, %v935
    %v949 = vpack.c.b16 %v938, %v937
    %v950 = vpack.c.b16 %v940, %v939
    %v951 = vpack.c.b16 %v942, %v941
    %v952 = vpack.c.b16 %v944, %v943
    %961 = vmatprep.subr.bf16.mxu0 0
    %962 = vmatpush1.bf16.msra.mxu0 %v945
    %963 = vmatprep.subr.bf16.mxu0 0
    %964 = vmatpush1.bf16.msra.mxu0 %v946
    %965 = vmatprep.subr.bf16.mxu0 0
    %966 = vmatpush1.bf16.msra.mxu0 %v947
    %967 = vmatprep.subr.bf16.mxu0 0
    %968 = vmatpush1.bf16.msra.mxu0 %v948
    %969 = vmatprep.subr.bf16.mxu0 0
    %970 = vmatpush1.bf16.msra.mxu0 %v949
    %971 = vmatprep.subr.bf16.mxu0 0
    %972 = vmatpush1.bf16.msra.mxu0 %v950
    %973 = vmatprep.subr.bf16.mxu0 0
    %974 = vmatpush1.bf16.msra.mxu0 %v951
    %975 = vmatprep.subr.bf16.mxu0 0
    %976 = vmatpush1.bf16.msra.mxu0 %v952
    %977 = vmatprep.subr.bf16.mxu0 0
    %978 = vmatpush1.bf16.msra.mxu0 0
    %979 = vmatprep.subr.bf16.mxu0 0
    %980 = vmatpush1.bf16.msra.mxu0 0
    %981 = vmatprep.subr.bf16.mxu0 0
    %982 = vmatpush1.bf16.msra.mxu0 0
    %983 = vmatprep.subr.bf16.mxu0 0
    %984 = vmatpush1.bf16.msra.mxu0 0
    %985 = vmatprep.subr.bf16.mxu0 0
    %986 = vmatpush1.bf16.msra.mxu0 0
    %987 = vmatprep.subr.bf16.mxu0 0
    %988 = vmatpush1.bf16.msra.mxu0 0
    %989 = vmatprep.subr.bf16.mxu0 0
    %990 = vmatpush1.bf16.msra.mxu0 0
    %991 = vmatprep.subr.bf16.mxu0 0
    %992 = vmatpush1.bf16.msra.mxu0 0
    %993 = vmatprep.mubr.bf16.mxu0 0
    %994 = vmatmul.mubr.bf16.gmra.mrb[0].mxu0 %v887
    %v995 = vpop.f32.mrb[0].mxu0
    %v996 = vadd.f32 %v911, %v995
    %v997 = vpop.f32.mrb[0].mxu0
    %v998 = vpop.f32.mrb[0].mxu0
    %v999 = vpop.f32.mrb[0].mxu0
    %1000 = vdwg.mxu0
    %v1001 = vmax.f32 %v996, 0.0
    %v1002 = vpack.c.bf16 %v1001, %v1001
    %s1003 = scalar_lea.vmem [#allocation6], 448
    %v1004 = vld [vmem:[%s1003] sm:$0xf]
    %v1005 = vld [vmem:[%s1003 + $0x4] sm:$0xf]
    %v1006 = vld [vmem:[%s1003 + $0x8] sm:$0xf]
    %v1007 = vld [vmem:[%s1003 + $0xc] sm:$0xf]
    %v1008 = vld [vmem:[%s1003 + $0x10] sm:$0xf]
    %v1009 = vld [vmem:[%s1003 + $0x14] sm:$0xf]
    %v1010 = vld [vmem:[%s1003 + $0x18] sm:$0xf]
    %v1011 = vld [vmem:[%s1003 + $0x1c] sm:$0xf]
    %v1012 = vld [vmem:[%s1003 + $0x20] sm:$0xf]
    %v1013 = vld [vmem:[%s1003 + $0x24] sm:$0xf]
    %v1014 = vld [vmem:[%s1003 + $0x28] sm:$0xf]
    %v1015 = vld [vmem:[%s1003 + $0x2c] sm:$0xf]
    %v1016 = vld [vmem:[%s1003 + $0x30] sm:$0xf]
    %v1017 = vld [vmem:[%s1003 + $0x34] sm:$0xf]
    %v1018 = vld [vmem:[%s1003 + $0x38] sm:$0xf]
    %v1019 = vld [vmem:[%s1003 + $0x3c] sm:$0xf]
    %s1020 = scalar_lea.vmem %s4, 7
    %v1021 = vld [vmem:[%s1020] sm:$0x1]
    %v1023 = vlaneseq
    %v1024 = vshrl.u32 %v1023, 7
    %v1025 = vsub.s32 0, %v1024
    %v1026 = vrot.slane %v1021, %v1025
    %v1044 = vunpack.c.l.b16 %v1004
    %v1045 = vunpack.c.l.b16 %v1005
    %v1046 = vunpack.c.l.b16 %v1006
    %v1047 = vunpack.c.l.b16 %v1007
    %v1048 = vunpack.c.l.b16 %v1008
    %v1049 = vunpack.c.l.b16 %v1009
    %v1050 = vunpack.c.l.b16 %v1010
    %v1051 = vunpack.c.l.b16 %v1011
    %v1052 = vunpack.c.l.b16 %v1012
    %v1053 = vunpack.c.l.b16 %v1013
    %v1054 = vunpack.c.l.b16 %v1014
    %v1055 = vunpack.c.l.b16 %v1015
    %v1056 = vunpack.c.l.b16 %v1016
    %v1057 = vunpack.c.l.b16 %v1017
    %v1058 = vunpack.c.l.b16 %v1018
    %v1059 = vunpack.c.l.b16 %v1019
    %v1060 = vpack.c.b16 %v1045, %v1044
    %v1061 = vpack.c.b16 %v1047, %v1046
    %v1062 = vpack.c.b16 %v1049, %v1048
    %v1063 = vpack.c.b16 %v1051, %v1050
    %v1064 = vpack.c.b16 %v1053, %v1052
    %v1065 = vpack.c.b16 %v1055, %v1054
    %v1066 = vpack.c.b16 %v1057, %v1056
    %v1067 = vpack.c.b16 %v1059, %v1058
    %1076 = vmatprep.subr.bf16.mxu0 0
    %1077 = vmatpush1.bf16.msra.mxu0 %v1060
    %1078 = vmatprep.subr.bf16.mxu0 0
    %1079 = vmatpush1.bf16.msra.mxu0 %v1061
    %1080 = vmatprep.subr.bf16.mxu0 0
    %1081 = vmatpush1.bf16.msra.mxu0 %v1062
    %1082 = vmatprep.subr.bf16.mxu0 0
    %1083 = vmatpush1.bf16.msra.mxu0 %v1063
    %1084 = vmatprep.subr.bf16.mxu0 0
    %1085 = vmatpush1.bf16.msra.mxu0 %v1064
    %1086 = vmatprep.subr.bf16.mxu0 0
    %1087 = vmatpush1.bf16.msra.mxu0 %v1065
    %1088 = vmatprep.subr.bf16.mxu0 0
    %1089 = vmatpush1.bf16.msra.mxu0 %v1066
    %1090 = vmatprep.subr.bf16.mxu0 0
    %1091 = vmatpush1.bf16.msra.mxu0 %v1067
    %1092 = vmatprep.subr.bf16.mxu0 0
    %1093 = vmatpush1.bf16.msra.mxu0 0
    %1094 = vmatprep.subr.bf16.mxu0 0
    %1095 = vmatpush1.bf16.msra.mxu0 0
    %1096 = vmatprep.subr.bf16.mxu0 0
    %1097 = vmatpush1.bf16.msra.mxu0 0
    %1098 = vmatprep.subr.bf16.mxu0 0
    %1099 = vmatpush1.bf16.msra.mxu0 0
    %1100 = vmatprep.subr.bf16.mxu0 0
    %1101 = vmatpush1.bf16.msra.mxu0 0
    %1102 = vmatprep.subr.bf16.mxu0 0
    %1103 = vmatpush1.bf16.msra.mxu0 0
    %1104 = vmatprep.subr.bf16.mxu0 0
    %1105 = vmatpush1.bf16.msra.mxu0 0
    %1106 = vmatprep.subr.bf16.mxu0 0
    %1107 = vmatpush1.bf16.msra.mxu0 0
    %1108 = vmatprep.mubr.bf16.mxu0 0
    %1109 = vmatmul.mubr.bf16.gmra.mrb[0].mxu0 %v1002
    %v1110 = vpop.f32.mrb[0].mxu0
    %v1111 = vadd.f32 %v1026, %v1110
    %v1112 = vpop.f32.mrb[0].mxu0
    %v1113 = vpop.f32.mrb[0].mxu0
    %v1114 = vpop.f32.mrb[0].mxu0
    %1115 = vdwg.mxu0
    %v1116 = vadd.f32 %v1111, %v886
    %v1117 = vmax.f32 %v1116, 0.0
    %v1118 = vpack.c.bf16 %v1117, %v1117
    %s1119 = scalar_lea.vmem [#allocation6], 512
    %v1120 = vld [vmem:[%s1119] sm:$0xf]
    %v1121 = vld [vmem:[%s1119 + $0x4] sm:$0xf]
    %v1122 = vld [vmem:[%s1119 + $0x8] sm:$0xf]
    %v1123 = vld [vmem:[%s1119 + $0xc] sm:$0xf]
    %v1124 = vld [vmem:[%s1119 + $0x10] sm:$0xf]
    %v1125 = vld [vmem:[%s1119 + $0x14] sm:$0xf]
    %v1126 = vld [vmem:[%s1119 + $0x18] sm:$0xf]
    %v1127 = vld [vmem:[%s1119 + $0x1c] sm:$0xf]
    %v1128 = vld [vmem:[%s1119 + $0x20] sm:$0xf]
    %v1129 = vld [vmem:[%s1119 + $0x24] sm:$0xf]
    %v1130 = vld [vmem:[%s1119 + $0x28] sm:$0xf]
    %v1131 = vld [vmem:[%s1119 + $0x2c] sm:$0xf]
    %v1132 = vld [vmem:[%s1119 + $0x30] sm:$0xf]
    %v1133 = vld [vmem:[%s1119 + $0x34] sm:$0xf]
    %v1134 = vld [vmem:[%s1119 + $0x38] sm:$0xf]
    %v1135 = vld [vmem:[%s1119 + $0x3c] sm:$0xf]
    %s1136 = scalar_lea.vmem %s4, 8
    %v1137 = vld [vmem:[%s1136] sm:$0x1]
    %v1139 = vlaneseq
    %v1140 = vshrl.u32 %v1139, 7
    %v1141 = vsub.s32 0, %v1140
    %v1142 = vrot.slane %v1137, %v1141
    %v1160 = vunpack.c.l.b16 %v1120
    %v1161 = vunpack.c.l.b16 %v1121
    %v1162 = vunpack.c.l.b16 %v1122
    %v1163 = vunpack.c.l.b16 %v1123
    %v1164 = vunpack.c.l.b16 %v1124
    %v1165 = vunpack.c.l.b16 %v1125
    %v1166 = vunpack.c.l.b16 %v1126
    %v1167 = vunpack.c.l.b16 %v1127
    %v1168 = vunpack.c.l.b16 %v1128
    %v1169 = vunpack.c.l.b16 %v1129
    %v1170 = vunpack.c.l.b16 %v1130
    %v1171 = vunpack.c.l.b16 %v1131
    %v1172 = vunpack.c.l.b16 %v1132
    %v1173 = vunpack.c.l.b16 %v1133
    %v1174 = vunpack.c.l.b16 %v1134
    %v1175 = vunpack.c.l.b16 %v1135
    %v1176 = vpack.c.b16 %v1161, %v1160
    %v1177 = vpack.c.b16 %v1163, %v1162
    %v1178 = vpack.c.b16 %v1165, %v1164
    %v1179 = vpack.c.b16 %v1167, %v1166
    %v1180 = vpack.c.b16 %v1169, %v1168
    %v1181 = vpack.c.b16 %v1171, %v1170
    %v1182 = vpack.c.b16 %v1173, %v1172
    %v1183 = vpack.c.b16 %v1175, %v1174
    %1192 = vmatprep.subr.bf16.mxu0 0
    %1193 = vmatpush1.bf16.msra.mxu0 %v1176
    %1194 = vmatprep.subr.bf16.mxu0 0
    %1195 = vmatpush1.bf16.msra.mxu0 %v1177
    %1196 = vmatprep.subr.bf16.mxu0 0
    %1197 = vmatpush1.bf16.msra.mxu0 %v1178
    %1198 = vmatprep.subr.bf16.mxu0 0
    %1199 = vmatpush1.bf16.msra.mxu0 %v1179
    %1200 = vmatprep.subr.bf16.mxu0 0
    %1201 = vmatpush1.bf16.msra.mxu0 %v1180
    %1202 = vmatprep.subr.bf16.mxu0 0
    %1203 = vmatpush1.bf16.msra.mxu0 %v1181
    %1204 = vmatprep.subr.bf16.mxu0 0
    %1205 = vmatpush1.bf16.msra.mxu0 %v1182
    %1206 = vmatprep.subr.bf16.mxu0 0
    %1207 = vmatpush1.bf16.msra.mxu0 %v1183
    %1208 = vmatprep.subr.bf16.mxu0 0
    %1209 = vmatpush1.bf16.msra.mxu0 0
    %1210 = vmatprep.subr.bf16.mxu0 0
    %1211 = vmatpush1.bf16.msra.mxu0 0
    %1212 = vmatprep.subr.bf16.mxu0 0
    %1213 = vmatpush1.bf16.msra.mxu0 0
    %1214 = vmatprep.subr.bf16.mxu0 0
    %1215 = vmatpush1.bf16.msra.mxu0 0
    %1216 = vmatprep.subr.bf16.mxu0 0
    %1217 = vmatpush1.bf16.msra.mxu0 0
    %1218 = vmatprep.subr.bf16.mxu0 0
    %1219 = vmatpush1.bf16.msra.mxu0 0
    %1220 = vmatprep.subr.bf16.mxu0 0
    %1221 = vmatpush1.bf16.msra.mxu0 0
    %1222 = vmatprep.subr.bf16.mxu0 0
    %1223 = vmatpush1.bf16.msra.mxu0 0
    %1224 = vmatprep.mubr.bf16.mxu0 0
    %1225 = vmatmul.mubr.bf16.gmra.mrb[0].mxu0 %v1118
    %v1226 = vpop.f32.mrb[0].mxu0
    %v1227 = vadd.f32 %v1142, %v1226
    %v1228 = vpop.f32.mrb[0].mxu0
    %v1229 = vpop.f32.mrb[0].mxu0
    %v1230 = vpop.f32.mrb[0].mxu0
    %1231 = vdwg.mxu0
    %v1232 = vmax.f32 %v1227, 0.0
    %v1233 = vpack.c.bf16 %v1232, %v1232
    %s1234 = scalar_lea.vmem [#allocation6], 576
    %v1235 = vld [vmem:[%s1234] sm:$0xf]
    %v1236 = vld [vmem:[%s1234 + $0x4] sm:$0xf]
    %v1237 = vld [vmem:[%s1234 + $0x8] sm:$0xf]
    %v1238 = vld [vmem:[%s1234 + $0xc] sm:$0xf]
    %v1239 = vld [vmem:[%s1234 + $0x10] sm:$0xf]
    %v1240 = vld [vmem:[%s1234 + $0x14] sm:$0xf]
    %v1241 = vld [vmem:[%s1234 + $0x18] sm:$0xf]
    %v1242 = vld [vmem:[%s1234 + $0x1c] sm:$0xf]
    %v1243 = vld [vmem:[%s1234 + $0x20] sm:$0xf]
    %v1244 = vld [vmem:[%s1234 + $0x24] sm:$0xf]
    %v1245 = vld [vmem:[%s1234 + $0x28] sm:$0xf]
    %v1246 = vld [vmem:[%s1234 + $0x2c] sm:$0xf]
    %v1247 = vld [vmem:[%s1234 + $0x30] sm:$0xf]
    %v1248 = vld [vmem:[%s1234 + $0x34] sm:$0xf]
    %v1249 = vld [vmem:[%s1234 + $0x38] sm:$0xf]
    %v1250 = vld [vmem:[%s1234 + $0x3c] sm:$0xf]
    %s1251 = scalar_lea.vmem %s4, 9
    %v1252 = vld [vmem:[%s1251] sm:$0x1]
    %v1254 = vlaneseq
    %v1255 = vshrl.u32 %v1254, 7
    %v1256 = vsub.s32 0, %v1255
    %v1257 = vrot.slane %v1252, %v1256
    %v1275 = vunpack.c.l.b16 %v1235
    %v1276 = vunpack.c.l.b16 %v1236
    %v1277 = vunpack.c.l.b16 %v1237
    %v1278 = vunpack.c.l.b16 %v1238
    %v1279 = vunpack.c.l.b16 %v1239
    %v1280 = vunpack.c.l.b16 %v1240
    %v1281 = vunpack.c.l.b16 %v1241
    %v1282 = vunpack.c.l.b16 %v1242
    %v1283 = vunpack.c.l.b16 %v1243
    %v1284 = vunpack.c.l.b16 %v1244
    %v1285 = vunpack.c.l.b16 %v1245
    %v1286 = vunpack.c.l.b16 %v1246
    %v1287 = vunpack.c.l.b16 %v1247
    %v1288 = vunpack.c.l.b16 %v1248
    %v1289 = vunpack.c.l.b16 %v1249
    %v1290 = vunpack.c.l.b16 %v1250
    %v1291 = vpack.c.b16 %v1276, %v1275
    %v1292 = vpack.c.b16 %v1278, %v1277
    %v1293 = vpack.c.b16 %v1280, %v1279
    %v1294 = vpack.c.b16 %v1282, %v1281
    %v1295 = vpack.c.b16 %v1284, %v1283
    %v1296 = vpack.c.b16 %v1286, %v1285
    %v1297 = vpack.c.b16 %v1288, %v1287
    %v1298 = vpack.c.b16 %v1290, %v1289
    %1307 = vmatprep.subr.bf16.mxu0 0
    %1308 = vmatpush1.bf16.msra.mxu0 %v1291
    %1309 = vmatprep.subr.bf16.mxu0 0
    %1310 = vmatpush1.bf16.msra.mxu0 %v1292
    %1311 = vmatprep.subr.bf16.mxu0 0
    %1312 = vmatpush1.bf16.msra.mxu0 %v1293
    %1313 = vmatprep.subr.bf16.mxu0 0
    %1314 = vmatpush1.bf16.msra.mxu0 %v1294
    %1315 = vmatprep.subr.bf16.mxu0 0
    %1316 = vmatpush1.bf16.msra.mxu0 %v1295
    %1317 = vmatprep.subr.bf16.mxu0 0
    %1318 = vmatpush1.bf16.msra.mxu0 %v1296
    %1319 = vmatprep.subr.bf16.mxu0 0
    %1320 = vmatpush1.bf16.msra.mxu0 %v1297
    %1321 = vmatprep.subr.bf16.mxu0 0
    %1322 = vmatpush1.bf16.msra.mxu0 %v1298
    %1323 = vmatprep.subr.bf16.mxu0 0
    %1324 = vmatpush1.bf16.msra.mxu0 0
    %1325 = vmatprep.subr.bf16.mxu0 0
    %1326 = vmatpush1.bf16.msra.mxu0 0
    %1327 = vmatprep.subr.bf16.mxu0 0
    %1328 = vmatpush1.bf16.msra.mxu0 0
    %1329 = vmatprep.subr.bf16.mxu0 0
    %1330 = vmatpush1.bf16.msra.mxu0 0
    %1331 = vmatprep.subr.bf16.mxu0 0
    %1332 = vmatpush1.bf16.msra.mxu0 0
    %1333 = vmatprep.subr.bf16.mxu0 0
    %1334 = vmatpush1.bf16.msra.mxu0 0
    %1335 = vmatprep.subr.bf16.mxu0 0
    %1336 = vmatpush1.bf16.msra.mxu0 0
    %1337 = vmatprep.subr.bf16.mxu0 0
    %1338 = vmatpush1.bf16.msra.mxu0 0
    %1339 = vmatprep.mubr.bf16.mxu0 0
    %1340 = vmatmul.mubr.bf16.gmra.mrb[0].mxu0 %v1233
    %v1341 = vpop.f32.mrb[0].mxu0
    %v1342 = vadd.f32 %v1257, %v1341
    %v1343 = vpop.f32.mrb[0].mxu0
    %v1344 = vpop.f32.mrb[0].mxu0
    %v1345 = vpop.f32.mrb[0].mxu0
    %1346 = vdwg.mxu0
    %v1347 = vadd.f32 %v1342, %v1117
    %v1348 = vmax.f32 %v1347, 0.0
    %v1349 = vpack.c.bf16 %v1348, %v1348
    %s1350 = scalar_lea.vmem [#allocation6], 640
    %v1351 = vld [vmem:[%s1350] sm:$0xf]
    %v1352 = vld [vmem:[%s1350 + $0x4] sm:$0xf]
    %v1353 = vld [vmem:[%s1350 + $0x8] sm:$0xf]
    %v1354 = vld [vmem:[%s1350 + $0xc] sm:$0xf]
    %v1355 = vld [vmem:[%s1350 + $0x10] sm:$0xf]
    %v1356 = vld [vmem:[%s1350 + $0x14] sm:$0xf]
    %v1357 = vld [vmem:[%s1350 + $0x18] sm:$0xf]
    %v1358 = vld [vmem:[%s1350 + $0x1c] sm:$0xf]
    %v1359 = vld [vmem:[%s1350 + $0x20] sm:$0xf]
    %v1360 = vld [vmem:[%s1350 + $0x24] sm:$0xf]
    %v1361 = vld [vmem:[%s1350 + $0x28] sm:$0xf]
    %v1362 = vld [vmem:[%s1350 + $0x2c] sm:$0xf]
    %v1363 = vld [vmem:[%s1350 + $0x30] sm:$0xf]
    %v1364 = vld [vmem:[%s1350 + $0x34] sm:$0xf]
    %v1365 = vld [vmem:[%s1350 + $0x38] sm:$0xf]
    %v1366 = vld [vmem:[%s1350 + $0x3c] sm:$0xf]
    %s1367 = scalar_lea.vmem %s4, 10
    %v1368 = vld [vmem:[%s1367] sm:$0x1]
    %v1370 = vlaneseq
    %v1371 = vshrl.u32 %v1370, 7
    %v1372 = vsub.s32 0, %v1371
    %v1373 = vrot.slane %v1368, %v1372
    %v1391 = vunpack.c.l.b16 %v1351
    %v1392 = vunpack.c.l.b16 %v1352
    %v1393 = vunpack.c.l.b16 %v1353
    %v1394 = vunpack.c.l.b16 %v1354
    %v1395 = vunpack.c.l.b16 %v1355
    %v1396 = vunpack.c.l.b16 %v1356
    %v1397 = vunpack.c.l.b16 %v1357
    %v1398 = vunpack.c.l.b16 %v1358
    %v1399 = vunpack.c.l.b16 %v1359
    %v1400 = vunpack.c.l.b16 %v1360
    %v1401 = vunpack.c.l.b16 %v1361
    %v1402 = vunpack.c.l.b16 %v1362
    %v1403 = vunpack.c.l.b16 %v1363
    %v1404 = vunpack.c.l.b16 %v1364
    %v1405 = vunpack.c.l.b16 %v1365
    %v1406 = vunpack.c.l.b16 %v1366
    %v1407 = vpack.c.b16 %v1392, %v1391
    %v1408 = vpack.c.b16 %v1394, %v1393
    %v1409 = vpack.c.b16 %v1396, %v1395
    %v1410 = vpack.c.b16 %v1398, %v1397
    %v1411 = vpack.c.b16 %v1400, %v1399
    %v1412 = vpack.c.b16 %v1402, %v1401
    %v1413 = vpack.c.b16 %v1404, %v1403
    %v1414 = vpack.c.b16 %v1406, %v1405
    %1423 = vmatprep.subr.bf16.mxu0 0
    %1424 = vmatpush1.bf16.msra.mxu0 %v1407
    %1425 = vmatprep.subr.bf16.mxu0 0
    %1426 = vmatpush1.bf16.msra.mxu0 %v1408
    %1427 = vmatprep.subr.bf16.mxu0 0
    %1428 = vmatpush1.bf16.msra.mxu0 %v1409
    %1429 = vmatprep.subr.bf16.mxu0 0
    %1430 = vmatpush1.bf16.msra.mxu0 %v1410
    %1431 = vmatprep.subr.bf16.mxu0 0
    %1432 = vmatpush1.bf16.msra.mxu0 %v1411
    %1433 = vmatprep.subr.bf16.mxu0 0
    %1434 = vmatpush1.bf16.msra.mxu0 %v1412
    %1435 = vmatprep.subr.bf16.mxu0 0
    %1436 = vmatpush1.bf16.msra.mxu0 %v1413
    %1437 = vmatprep.subr.bf16.mxu0 0
    %1438 = vmatpush1.bf16.msra.mxu0 %v1414
    %1439 = vmatprep.subr.bf16.mxu0 0
    %1440 = vmatpush1.bf16.msra.mxu0 0
    %1441 = vmatprep.subr.bf16.mxu0 0
    %1442 = vmatpush1.bf16.msra.mxu0 0
    %1443 = vmatprep.subr.bf16.mxu0 0
    %1444 = vmatpush1.bf16.msra.mxu0 0
    %1445 = vmatprep.subr.bf16.mxu0 0
    %1446 = vmatpush1.bf16.msra.mxu0 0
    %1447 = vmatprep.subr.bf16.mxu0 0
    %1448 = vmatpush1.bf16.msra.mxu0 0
    %1449 = vmatprep.subr.bf16.mxu0 0
    %1450 = vmatpush1.bf16.msra.mxu0 0
    %1451 = vmatprep.subr.bf16.mxu0 0
    %1452 = vmatpush1.bf16.msra.mxu0 0
    %1453 = vmatprep.subr.bf16.mxu0 0
    %1454 = vmatpush1.bf16.msra.mxu0 0
    %1455 = vmatprep.mubr.bf16.mxu0 0
    %1456 = vmatmul.mubr.bf16.gmra.mrb[0].mxu0 %v1349
    %v1457 = vpop.f32.mrb[0].mxu0
    %v1458 = vadd.f32 %v1373, %v1457
    %v1459 = vpop.f32.mrb[0].mxu0
    %v1460 = vpop.f32.mrb[0].mxu0
    %v1461 = vpop.f32.mrb[0].mxu0
    %1462 = vdwg.mxu0
    %v1463 = vmax.f32 %v1458, 0.0
    %v1464 = vpack.c.bf16 %v1463, %v1463
    %s1465 = scalar_lea.vmem [#allocation6], 704
    %v1466 = vld [vmem:[%s1465] sm:$0xf]
    %v1467 = vld [vmem:[%s1465 + $0x4] sm:$0xf]
    %v1468 = vld [vmem:[%s1465 + $0x8] sm:$0xf]
    %v1469 = vld [vmem:[%s1465 + $0xc] sm:$0xf]
    %v1470 = vld [vmem:[%s1465 + $0x10] sm:$0xf]
    %v1471 = vld [vmem:[%s1465 + $0x14] sm:$0xf]
    %v1472 = vld [vmem:[%s1465 + $0x18] sm:$0xf]
    %v1473 = vld [vmem:[%s1465 + $0x1c] sm:$0xf]
    %v1474 = vld [vmem:[%s1465 + $0x20] sm:$0xf]
    %v1475 = vld [vmem:[%s1465 + $0x24] sm:$0xf]
    %v1476 = vld [vmem:[%s1465 + $0x28] sm:$0xf]
    %v1477 = vld [vmem:[%s1465 + $0x2c] sm:$0xf]
    %v1478 = vld [vmem:[%s1465 + $0x30] sm:$0xf]
    %v1479 = vld [vmem:[%s1465 + $0x34] sm:$0xf]
    %v1480 = vld [vmem:[%s1465 + $0x38] sm:$0xf]
    %v1481 = vld [vmem:[%s1465 + $0x3c] sm:$0xf]
    %s1482 = scalar_lea.vmem %s4, 11
    %v1483 = vld [vmem:[%s1482] sm:$0x1]
    %v1485 = vlaneseq
    %v1486 = vshrl.u32 %v1485, 7
    %v1487 = vsub.s32 0, %v1486
    %v1488 = vrot.slane %v1483, %v1487
    %v1506 = vunpack.c.l.b16 %v1466
    %v1507 = vunpack.c.l.b16 %v1467
    %v1508 = vunpack.c.l.b16 %v1468
    %v1509 = vunpack.c.l.b16 %v1469
    %v1510 = vunpack.c.l.b16 %v1470
    %v1511 = vunpack.c.l.b16 %v1471
    %v1512 = vunpack.c.l.b16 %v1472
    %v1513 = vunpack.c.l.b16 %v1473
    %v1514 = vunpack.c.l.b16 %v1474
    %v1515 = vunpack.c.l.b16 %v1475
    %v1516 = vunpack.c.l.b16 %v1476
    %v1517 = vunpack.c.l.b16 %v1477
    %v1518 = vunpack.c.l.b16 %v1478
    %v1519 = vunpack.c.l.b16 %v1479
    %v1520 = vunpack.c.l.b16 %v1480
    %v1521 = vunpack.c.l.b16 %v1481
    %v1522 = vpack.c.b16 %v1507, %v1506
    %v1523 = vpack.c.b16 %v1509, %v1508
    %v1524 = vpack.c.b16 %v1511, %v1510
    %v1525 = vpack.c.b16 %v1513, %v1512
    %v1526 = vpack.c.b16 %v1515, %v1514
    %v1527 = vpack.c.b16 %v1517, %v1516
    %v1528 = vpack.c.b16 %v1519, %v1518
    %v1529 = vpack.c.b16 %v1521, %v1520
    %1538 = vmatprep.subr.bf16.mxu0 0
    %1539 = vmatpush1.bf16.msra.mxu0 %v1522
    %1540 = vmatprep.subr.bf16.mxu0 0
    %1541 = vmatpush1.bf16.msra.mxu0 %v1523
    %1542 = vmatprep.subr.bf16.mxu0 0
    %1543 = vmatpush1.bf16.msra.mxu0 %v1524
    %1544 = vmatprep.subr.bf16.mxu0 0
    %1545 = vmatpush1.bf16.msra.mxu0 %v1525
    %1546 = vmatprep.subr.bf16.mxu0 0
    %1547 = vmatpush1.bf16.msra.mxu0 %v1526
    %1548 = vmatprep.subr.bf16.mxu0 0
    %1549 = vmatpush1.bf16.msra.mxu0 %v1527
    %1550 = vmatprep.subr.bf16.mxu0 0
    %1551 = vmatpush1.bf16.msra.mxu0 %v1528
    %1552 = vmatprep.subr.bf16.mxu0 0
    %1553 = vmatpush1.bf16.msra.mxu0 %v1529
    %1554 = vmatprep.subr.bf16.mxu0 0
    %1555 = vmatpush1.bf16.msra.mxu0 0
    %1556 = vmatprep.subr.bf16.mxu0 0
    %1557 = vmatpush1.bf16.msra.mxu0 0
    %1558 = vmatprep.subr.bf16.mxu0 0
    %1559 = vmatpush1.bf16.msra.mxu0 0
    %1560 = vmatprep.subr.bf16.mxu0 0
    %1561 = vmatpush1.bf16.msra.mxu0 0
    %1562 = vmatprep.subr.bf16.mxu0 0
    %1563 = vmatpush1.bf16.msra.mxu0 0
    %1564 = vmatprep.subr.bf16.mxu0 0
    %1565 = vmatpush1.bf16.msra.mxu0 0
    %1566 = vmatprep.subr.bf16.mxu0 0
    %1567 = vmatpush1.bf16.msra.mxu0 0
    %1568 = vmatprep.subr.bf16.mxu0 0
    %1569 = vmatpush1.bf16.msra.mxu0 0
    %1570 = vmatprep.mubr.bf16.mxu0 0
    %1571 = vmatmul.mubr.bf16.gmra.mrb[0].mxu0 %v1464
    %v1572 = vpop.f32.mrb[0].mxu0
    %v1573 = vadd.f32 %v1488, %v1572
    %v1574 = vpop.f32.mrb[0].mxu0
    %v1575 = vpop.f32.mrb[0].mxu0
    %v1576 = vpop.f32.mrb[0].mxu0
    %1577 = vdwg.mxu0
    %v1578 = vadd.f32 %v1573, %v1348
    %v1579 = vmax.f32 %v1578, 0.0
    %v1580 = vpack.c.bf16 %v1579, %v1579
    %v1581 = vld [vmem:[#allocation7] sm:$0xff]
    %v1582 = vld [vmem:[#allocation7 + $0x8] sm:$0xff]
    %v1583 = vld [vmem:[#allocation7 + $0x10] sm:$0xff]
    %v1584 = vld [vmem:[#allocation7 + $0x18] sm:$0xff]
    %v1585 = vld [vmem:[#allocation7 + $0x20] sm:$0xff]
    %v1586 = vld [vmem:[#allocation7 + $0x28] sm:$0xff]
    %v1587 = vld [vmem:[#allocation7 + $0x30] sm:$0xff]
    %v1588 = vld [vmem:[#allocation7 + $0x38] sm:$0xff]
    %v1589 = vld [vmem:[#allocation7 + $0x40] sm:$0xff]
    %v1590 = vld [vmem:[#allocation7 + $0x48] sm:$0xff]
    %v1591 = vld [vmem:[#allocation7 + $0x50] sm:$0xff]
    %v1592 = vld [vmem:[#allocation7 + $0x58] sm:$0xff]
    %v1593 = vld [vmem:[#allocation7 + $0x60] sm:$0xff]
    %v1594 = vld [vmem:[#allocation7 + $0x68] sm:$0xff]
    %v1595 = vld [vmem:[#allocation7 + $0x70] sm:$0xff]
    %v1596 = vld [vmem:[#allocation7 + $0x78] sm:$0xff]
    %v1597 = vld [vmem:[#allocation7 + $0x80] sm:$0xff]
    %v1598 = vld [vmem:[#allocation7 + $0x88] sm:$0xff]
    %v1599 = vld [vmem:[#allocation7 + $0x90] sm:$0xff]
    %v1600 = vld [vmem:[#allocation7 + $0x98] sm:$0xff]
    %v1601 = vld [vmem:[#allocation7 + $0xa0] sm:$0xff]
    %v1602 = vld [vmem:[#allocation7 + $0xa8] sm:$0xff]
    %v1603 = vld [vmem:[#allocation7 + $0xb0] sm:$0xff]
    %v1604 = vld [vmem:[#allocation7 + $0xb8] sm:$0xff]
    %v1605 = vld [vmem:[#allocation7 + $0xc0] sm:$0xff]
    %v1606 = vld [vmem:[#allocation7 + $0xc8] sm:$0xff]
    %v1607 = vld [vmem:[#allocation7 + $0xd0] sm:$0xff]
    %v1608 = vld [vmem:[#allocation7 + $0xd8] sm:$0xff]
    %v1609 = vld [vmem:[#allocation7 + $0xe0] sm:$0xff]
    %v1610 = vld [vmem:[#allocation7 + $0xe8] sm:$0xff]
    %v1611 = vld [vmem:[#allocation7 + $0xf0] sm:$0xff]
    %v1612 = vld [vmem:[#allocation7 + $0xf8] sm:$0xff]
    %v1613 = vld [vmem:[%s6] sm:$0xf]
    %v1615 = vlaneseq
    %v1616 = vshrl.u32 %v1615, 7
    %v1617 = vsub.s32 0, %v1616
    %v1618 = vrot.slane %v1613, %v1617
    %v1619 = vlaneseq
    %v1620 = vshrl.u32 %v1619, 7
    %v1621 = vsub.s32 1, %v1620
    %v1622 = vrot.slane %v1613, %v1621
    %v1623 = vlaneseq
    %v1624 = vshrl.u32 %v1623, 7
    %v1625 = vsub.s32 2, %v1624
    %v1626 = vrot.slane %v1613, %v1625
    %v1627 = vlaneseq
    %v1628 = vshrl.u32 %v1627, 7
    %v1629 = vsub.s32 3, %v1628
    %v1630 = vrot.slane %v1613, %v1629
    %v1667 = vunpack.c.l.b16 %v1581
    %v1668 = vunpack.c.h.b16 %v1581
    %v1669 = vunpack.c.l.b16 %v1582
    %v1670 = vunpack.c.h.b16 %v1582
    %v1671 = vunpack.c.l.b16 %v1583
    %v1672 = vunpack.c.h.b16 %v1583
    %v1673 = vunpack.c.l.b16 %v1584
    %v1674 = vunpack.c.h.b16 %v1584
    %v1675 = vunpack.c.l.b16 %v1585
    %v1676 = vunpack.c.h.b16 %v1585
    %v1677 = vunpack.c.l.b16 %v1586
    %v1678 = vunpack.c.h.b16 %v1586
    %v1679 = vunpack.c.l.b16 %v1587
    %v1680 = vunpack.c.h.b16 %v1587
    %v1681 = vunpack.c.l.b16 %v1588
    %v1682 = vunpack.c.h.b16 %v1588
    %v1683 = vunpack.c.l.b16 %v1589
    %v1684 = vunpack.c.h.b16 %v1589
    %v1685 = vunpack.c.l.b16 %v1590
    %v1686 = vunpack.c.h.b16 %v1590
    %v1687 = vunpack.c.l.b16 %v1591
    %v1688 = vunpack.c.h.b16 %v1591
    %v1689 = vunpack.c.l.b16 %v1592
    %v1690 = vunpack.c.h.b16 %v1592
    %v1691 = vunpack.c.l.b16 %v1593
    %v1692 = vunpack.c.h.b16 %v1593
    %v1693 = vunpack.c.l.b16 %v1594
    %v1694 = vunpack.c.h.b16 %v1594
    %v1695 = vunpack.c.l.b16 %v1595
    %v1696 = vunpack.c.h.b16 %v1595
    %v1697 = vunpack.c.l.b16 %v1596
    %v1698 = vunpack.c.h.b16 %v1596
    %v1699 = vunpack.c.l.b16 %v1597
    %v1700 = vunpack.c.h.b16 %v1597
    %v1701 = vunpack.c.l.b16 %v1598
    %v1702 = vunpack.c.h.b16 %v1598
    %v1703 = vunpack.c.l.b16 %v1599
    %v1704 = vunpack.c.h.b16 %v1599
    %v1705 = vunpack.c.l.b16 %v1600
    %v1706 = vunpack.c.h.b16 %v1600
    %v1707 = vunpack.c.l.b16 %v1601
    %v1708 = vunpack.c.h.b16 %v1601
    %v1709 = vunpack.c.l.b16 %v1602
    %v1710 = vunpack.c.h.b16 %v1602
    %v1711 = vunpack.c.l.b16 %v1603
    %v1712 = vunpack.c.h.b16 %v1603
    %v1713 = vunpack.c.l.b16 %v1604
    %v1714 = vunpack.c.h.b16 %v1604
    %v1715 = vunpack.c.l.b16 %v1605
    %v1716 = vunpack.c.h.b16 %v1605
    %v1717 = vunpack.c.l.b16 %v1606
    %v1718 = vunpack.c.h.b16 %v1606
    %v1719 = vunpack.c.l.b16 %v1607
    %v1720 = vunpack.c.h.b16 %v1607
    %v1721 = vunpack.c.l.b16 %v1608
    %v1722 = vunpack.c.h.b16 %v1608
    %v1723 = vunpack.c.l.b16 %v1609
    %v1724 = vunpack.c.h.b16 %v1609
    %v1725 = vunpack.c.l.b16 %v1610
    %v1726 = vunpack.c.h.b16 %v1610
    %v1727 = vunpack.c.l.b16 %v1611
    %v1728 = vunpack.c.h.b16 %v1611
    %v1729 = vunpack.c.l.b16 %v1612
    %v1730 = vunpack.c.h.b16 %v1612
    %v1731 = vpack.c.b16 %v1671, %v1667
    %v1732 = vpack.c.b16 %v1672, %v1668
    %v1733 = vpack.c.b16 %v1673, %v1669
    %v1734 = vpack.c.b16 %v1674, %v1670
    %v1735 = vpack.c.b16 %v1679, %v1675
    %v1736 = vpack.c.b16 %v1680, %v1676
    %v1737 = vpack.c.b16 %v1681, %v1677
    %v1738 = vpack.c.b16 %v1682, %v1678
    %v1739 = vpack.c.b16 %v1687, %v1683
    %v1740 = vpack.c.b16 %v1688, %v1684
    %v1741 = vpack.c.b16 %v1689, %v1685
    %v1742 = vpack.c.b16 %v1690, %v1686
    %v1743 = vpack.c.b16 %v1695, %v1691
    %v1744 = vpack.c.b16 %v1696, %v1692
    %v1745 = vpack.c.b16 %v1697, %v1693
    %v1746 = vpack.c.b16 %v1698, %v1694
    %v1747 = vpack.c.b16 %v1703, %v1699
    %v1748 = vpack.c.b16 %v1704, %v1700
    %v1749 = vpack.c.b16 %v1705, %v1701
    %v1750 = vpack.c.b16 %v1706, %v1702
    %v1751 = vpack.c.b16 %v1711, %v1707
    %v1752 = vpack.c.b16 %v1712, %v1708
    %v1753 = vpack.c.b16 %v1713, %v1709
    %v1754 = vpack.c.b16 %v1714, %v1710
    %v1755 = vpack.c.b16 %v1719, %v1715
    %v1756 = vpack.c.b16 %v1720, %v1716
    %v1757 = vpack.c.b16 %v1721, %v1717
    %v1758 = vpack.c.b16 %v1722, %v1718
    %v1759 = vpack.c.b16 %v1727, %v1723
    %v1760 = vpack.c.b16 %v1728, %v1724
    %v1761 = vpack.c.b16 %v1729, %v1725
    %v1762 = vpack.c.b16 %v1730, %v1726
    %1795 = vmatprep.subr.bf16.mxu0 %v1732
    %1796 = vmatpush1.bf16.msra.mxu0 %v1731
    %1797 = vmatprep.subr.bf16.mxu0 %v1736
    %1798 = vmatpush1.bf16.msra.mxu0 %v1735
    %1799 = vmatprep.subr.bf16.mxu0 %v1740
    %1800 = vmatpush1.bf16.msra.mxu0 %v1739
    %1801 = vmatprep.subr.bf16.mxu0 %v1744
    %1802 = vmatpush1.bf16.msra.mxu0 %v1743
    %1803 = vmatprep.subr.bf16.mxu0 %v1748
    %1804 = vmatpush1.bf16.msra.mxu0 %v1747
    %1805 = vmatprep.subr.bf16.mxu0 %v1752
    %1806 = vmatpush1.bf16.msra.mxu0 %v1751
    %1807 = vmatprep.subr.bf16.mxu0 %v1756
    %1808 = vmatpush1.bf16.msra.mxu0 %v1755
    %1809 = vmatprep.subr.bf16.mxu0 %v1760
    %1810 = vmatpush1.bf16.msra.mxu0 %v1759
    %1811 = vmatprep.subr.bf16.mxu0 0
    %1812 = vmatpush1.bf16.msra.mxu0 0
    %1813 = vmatprep.subr.bf16.mxu0 0
    %1814 = vmatpush1.bf16.msra.mxu0 0
    %1815 = vmatprep.subr.bf16.mxu0 0
    %1816 = vmatpush1.bf16.msra.mxu0 0
    %1817 = vmatprep.subr.bf16.mxu0 0
    %1818 = vmatpush1.bf16.msra.mxu0 0
    %1819 = vmatprep.subr.bf16.mxu0 0
    %1820 = vmatpush1.bf16.msra.mxu0 0
    %1821 = vmatprep.subr.bf16.mxu0 0
    %1822 = vmatpush1.bf16.msra.mxu0 0
    %1823 = vmatprep.subr.bf16.mxu0 0
    %1824 = vmatpush1.bf16.msra.mxu0 0
    %1825 = vmatprep.subr.bf16.mxu0 0
    %1826 = vmatpush1.bf16.msra.mxu0 0
    %1827 = vmatprep.mubr.bf16.mxu0 0
    %1828 = vmatmul.mubr.bf16.gmra.mrb[0].mxu0 %v1580
    %v1829 = vpop.f32.mrb[0].mxu0
    %v1830 = vadd.f32 %v1618, %v1829
    %v1831 = vpop.f32.mrb[0].mxu0
    %v1832 = vadd.f32 %v1622, %v1831
    %v1833 = vpop.f32.mrb[0].mxu0
    %v1834 = vpop.f32.mrb[0].mxu0
    %1835 = vdwg.mxu0
    %1836 = vmatprep.subr.bf16.mxu0 %v1734
    %1837 = vmatpush1.bf16.msra.mxu0 %v1733
    %1838 = vmatprep.subr.bf16.mxu0 %v1738
    %1839 = vmatpush1.bf16.msra.mxu0 %v1737
    %1840 = vmatprep.subr.bf16.mxu0 %v1742
    %1841 = vmatpush1.bf16.msra.mxu0 %v1741
    %1842 = vmatprep.subr.bf16.mxu0 %v1746
    %1843 = vmatpush1.bf16.msra.mxu0 %v1745
    %1844 = vmatprep.subr.bf16.mxu0 %v1750
    %1845 = vmatpush1.bf16.msra.mxu0 %v1749
    %1846 = vmatprep.subr.bf16.mxu0 %v1754
    %1847 = vmatpush1.bf16.msra.mxu0 %v1753
    %1848 = vmatprep.subr.bf16.mxu0 %v1758
    %1849 = vmatpush1.bf16.msra.mxu0 %v1757
    %1850 = vmatprep.subr.bf16.mxu0 %v1762
    %1851 = vmatpush1.bf16.msra.mxu0 %v1761
    %1852 = vmatprep.subr.bf16.mxu0 0
    %1853 = vmatpush1.bf16.msra.mxu0 0
    %1854 = vmatprep.subr.bf16.mxu0 0
    %1855 = vmatpush1.bf16.msra.mxu0 0
    %1856 = vmatprep.subr.bf16.mxu0 0
    %1857 = vmatpush1.bf16.msra.mxu0 0
    %1858 = vmatprep.subr.bf16.mxu0 0
    %1859 = vmatpush1.bf16.msra.mxu0 0
    %1860 = vmatprep.subr.bf16.mxu0 0
    %1861 = vmatpush1.bf16.msra.mxu0 0
    %1862 = vmatprep.subr.bf16.mxu0 0
    %1863 = vmatpush1.bf16.msra.mxu0 0
    %1864 = vmatprep.subr.bf16.mxu0 0
    %1865 = vmatpush1.bf16.msra.mxu0 0
    %1866 = vmatprep.subr.bf16.mxu0 0
    %1867 = vmatpush1.bf16.msra.mxu0 0
    %1868 = vmatprep.mubr.bf16.mxu0 0
    %1869 = vmatmul.mubr.bf16.gmra.mrb[0].mxu0 %v1580
    %v1870 = vpop.f32.mrb[0].mxu0
    %v1871 = vadd.f32 %v1626, %v1870
    %v1872 = vpop.f32.mrb[0].mxu0
    %v1873 = vadd.f32 %v1630, %v1872
    %v1874 = vpop.f32.mrb[0].mxu0
    %v1875 = vpop.f32.mrb[0].mxu0
    %1876 = vdwg.mxu0
    %v1877 = vmax.f32 %v1830, 0.0
    %v1878 = vmax.f32 %v1832, 0.0
    %v1879 = vmax.f32 %v1871, 0.0
    %v1880 = vmax.f32 %v1873, 0.0
    %v1881 = vld [vmem:[%s7] sm:$0xf]
    %v1883 = vlaneseq
    %v1884 = vshrl.u32 %v1883, 7
    %v1885 = vsub.s32 0, %v1884
    %v1886 = vrot.slane %v1881, %v1885
    %v1887 = vlaneseq
    %v1888 = vshrl.u32 %v1887, 7
    %v1889 = vsub.s32 1, %v1888
    %v1890 = vrot.slane %v1881, %v1889
    %v1891 = vlaneseq
    %v1892 = vshrl.u32 %v1891, 7
    %v1893 = vsub.s32 2, %v1892
    %v1894 = vrot.slane %v1881, %v1893
    %v1895 = vlaneseq
    %v1896 = vshrl.u32 %v1895, 7
    %v1897 = vsub.s32 3, %v1896
    %v1898 = vrot.slane %v1881, %v1897
    %v1903 = vmul.f32 %v1877, %v1886
    %v1904 = vmul.f32 %v1878, %v1890
    %v1905 = vmul.f32 %v1879, %v1894
    %v1906 = vmul.f32 %v1880, %v1898
    %1907 = vadd.xlane.f32.xlu0 %v1903
    %v1908 = vpop.xlane.xlu0 %1907
    %1909 = vadd.xlane.f32.xlu0 %v1904
    %v1910 = vpop.xlane.xlu0 %1909
    %1911 = vadd.xlane.f32.xlu0 %v1905
    %v1912 = vpop.xlane.xlu0 %1911
    %1913 = vadd.xlane.f32.xlu0 %v1906
    %v1914 = vpop.xlane.xlu0 %1913
    %vm1915 = vcmask 7168
    %v1916 = vsel %vm1915, %v1908, %v1910
    %vm1917 = vcmask 15360
    %v1918 = vsel %vm1917, %v1916, %v1912
    %vm1919 = vcmask 23552
    %v1920 = vsel %vm1919, %v1918, %v1914
    %v1921 = vadd.f32 %v1920, -0.02534082
    %vm1922 = vcmask 31744
    %1923 = vst.msk [vmem:[%s8] sm:$0xff] %vm1922, %v1921
    // Predicated region
    $region50: #{tpu_custom_call.1} parent=1 // pred_check
      _
    $region51: #{tpu_custom_call.1} parent=1 // pred_check_branch
      %1925 = sbr.rel (0) target = $region53
    $region52: #{tpu_custom_call.1} parent=1 // pred_region
      _
    $region53: #{tpu_custom_call.1} parent=1 // pred_fallthru
      _
    // Predicated region
    $region54: #{tpu_custom_call.1} parent=1 // pred_check
      _
    $region55: #{tpu_custom_call.1} parent=1 // pred_check_branch
      %1927 = sbr.rel (0) target = $region57
    $region56: #{tpu_custom_call.1} parent=1 // pred_region
      _
    $region57: #{tpu_custom_call.1} parent=1 // pred_fallthru
      _
    %1928 = vsyncpa [#allocation3], 1
    %1929 = vsyncpa [#allocation5], 1
    %1930 = vsyncpa [#allocation8], 1

</llo_original>
